<compile_context>
chip_gen: v5e
topology: v5e:2x2
jax: 0.10.0
libtpu: 0.0.40
codegen_flags: <defaults>
</compile_context>

<pallas_src>
import functools

import jax
import jax.numpy as jnp
from jax.experimental import pallas as pl
from jax.experimental.pallas import tpu as pltpu

F_IN = 773      # chess bitboard feature size
HID = 256
OUT = 1
OUT_PAD = 128   # lane-dense padded output width


def _round_up(n, m):
    return ((n + m - 1) // m) * m


def _mlp_kernel(x_ref, w1_ref, b1_ref, w2_ref, b2_ref, o_ref):
    # First layer: (TB, 773) @ (773, 256) on the MXU, f32 accumulation.
    # x arrives in its storage dtype; cast to bf16 on-chip (free-ish VPU work,
    # no extra HBM traffic) so the MXU runs at its native bf16 rate.
    x = x_ref[...].astype(jnp.bfloat16)
    h = jnp.dot(x, w1_ref[...], preferred_element_type=jnp.float32)
    h = jnp.maximum(h + b1_ref[...], 0.0)          # bias add + ReLU in f32
    # Second layer: (TB, 256) @ (256, 128); only lane 0 is the real output.
    o = jnp.dot(h.astype(jnp.bfloat16), w2_ref[...],
                preferred_element_type=jnp.float32)
    o_ref[...] = o + b2_ref[...]


def prepare_params(w1, b1, w2, b2):
    """One-time parameter prep (hoisted off the per-call path).

    w1: (773, 256), b1: (256,), w2: (256, 1), b2: (1,)  -- already (in, out) layout
    (i.e. transposed relative to PyTorch's nn.Linear weight).
    """
    w1b = w1.astype(jnp.bfloat16)                                   # (773, 256)
    b1p = b1.reshape(1, HID).astype(jnp.float32)                    # (1, 256)
    w2p = jnp.zeros((HID, OUT_PAD), jnp.bfloat16).at[:, :OUT].set(
        w2.astype(jnp.bfloat16))                                    # (256, 128)
    b2p = jnp.zeros((1, OUT_PAD), jnp.float32).at[:, :OUT].set(
        b2.reshape(1, OUT).astype(jnp.float32))                     # (1, 128)
    return w1b, b1p, w2p, b2p


@functools.partial(jax.jit, static_argnames=("tb",))
def chess_net_forward(x, prepared, *, tb=1024):
    """x: (B, 773) float32 (or bfloat16).  Returns (B, 1) float32.

    tb: batch tile (rows per grid step). Default 1024 keeps double-buffered f32
    x tiles well under the 16 MiB scoped-VMEM default on v5e and far under the
    v6e/v7x budgets; it is clamped down for small B.
    """
    w1b, b1p, w2p, b2p = prepared
    B = x.shape[0]
    tb = min(tb, _round_up(B, 8))          # tb stays a multiple of 8 sublanes
    grid = (pl.cdiv(B, tb),)               # partial last tile is masked by Pallas

    out_padded = pl.pallas_call(
        _mlp_kernel,
        out_shape=jax.ShapeDtypeStruct((B, OUT_PAD), jnp.float32),
        grid=grid,
        in_specs=[
            pl.BlockSpec((tb, F_IN), lambda i: (i, 0)),      # x: batch-tiled
            pl.BlockSpec((F_IN, HID), lambda i: (0, 0)),     # W1: VMEM-resident
            pl.BlockSpec((1, HID), lambda i: (0, 0)),        # b1
            pl.BlockSpec((HID, OUT_PAD), lambda i: (0, 0)),  # W2
            pl.BlockSpec((1, OUT_PAD), lambda i: (0, 0)),    # b2
        ],
        out_specs=pl.BlockSpec((tb, OUT_PAD), lambda i: (i, 0)),
        compiler_params=pltpu.CompilerParams(
            dimension_semantics=("parallel",),   # megacore-shard batch tiles on v7x
        ),
    )(x, w1b, b1p, w2p, b2p)

    # TODO(synk): if output bandwidth ever shows in profiles, emit a lane-on-batch
    # layout instead of slicing a (B, 128) slab.
    return out_padded[:, :OUT]


def init_params(key):
    """Deterministic init matching nn.Linear shapes (uniform +-1/sqrt(fan_in))."""
    k1, k2, k3, k4 = jax.random.split(key, 4)
    bound1 = 1.0 / jnp.sqrt(jnp.float32(F_IN))
    bound2 = 1.0 / jnp.sqrt(jnp.float32(HID))
    # Stored transposed vs PyTorch: (in, out).
    w1 = jax.random.uniform(k1, (F_IN, HID), jnp.float32, -bound1, bound1)
    b1 = jax.random.uniform(k2, (HID,), jnp.float32, -bound1, bound1)
    w2 = jax.random.uniform(k3, (HID, OUT), jnp.float32, -bound2, bound2)
    b2 = jax.random.uniform(k4, (OUT,), jnp.float32, -bound2, bound2)
    return w1, b1, w2, b2


if __name__ == "__main__":
    key = jax.random.PRNGKey(0)
    kx, kp = jax.random.split(key)

    B = 512  # small demo batch; tb=128 below exercises a 4-step pipelined grid
    # 0/1 board-like features (exactly representable in bf16).
    x = (jax.random.uniform(kx, (B, F_IN), jnp.float32) > 0.5).astype(jnp.float32)
    w1, b1, w2, b2 = init_params(kp)
    prepared = prepare_params(w1, b1, w2, b2)

    out = chess_net_forward(x, prepared, tb=128)
    out = jax.block_until_ready(out)

    # Reference 1: same bf16-weight / f32-accumulate math as the kernel.
    w1b = w1.astype(jnp.bfloat16)
    w2b = w2.astype(jnp.bfloat16)
    h_ref = jnp.maximum(
        jnp.dot(x.astype(jnp.bfloat16), w1b, preferred_element_type=jnp.float32) + b1,
        0.0)
    ref_bf16 = jnp.dot(h_ref.astype(jnp.bfloat16), w2b,
                       preferred_element_type=jnp.float32) + b2

    # Reference 2: pure f32 module semantics (loose tolerance for the bf16 path).
    ref_f32 = jnp.maximum(x @ w1 + b1, 0.0) @ w2 + b2

    assert out.shape == (B, 1)
    assert jnp.allclose(out, ref_bf16, atol=2e-3, rtol=2e-3), \
        float(jnp.max(jnp.abs(out - ref_bf16)))
    assert jnp.allclose(out, ref_f32, atol=2e-2, rtol=2e-2), \
        float(jnp.max(jnp.abs(out - ref_f32)))

    print("KERNEL_OK")
</pallas_src>

<mosaic_0001>
module attributes {stable_mosaic.version = 11 : i64} {
  func.func @_mlp_kernel(%arg0: i32, %arg1: memref<128x773xf32, #tpu.memory_space<vmem>>, %arg2: memref<773x256xbf16, #tpu.memory_space<vmem>>, %arg3: memref<1x256xf32, #tpu.memory_space<vmem>>, %arg4: memref<256x128xbf16, #tpu.memory_space<vmem>>, %arg5: memref<1x128xf32, #tpu.memory_space<vmem>>, %arg6: memref<128x128xf32, #tpu.memory_space<vmem>>) attributes {dimension_semantics = [#tpu.dimension_semantics<parallel>], iteration_bounds = array<i64: 4>, scalar_prefetch = 0 : i64, scratch_operands = 0 : i64, tpu.core_type = #tpu.core_type<tc>, window_params = [{transform_indices = @transform_0, window_bounds = array<i64: 128, 773>}, {pipeline_mode = #tpu.pipeline_mode<synchronous>, transform_indices = @transform_1, window_bounds = array<i64: 773, 256>}, {pipeline_mode = #tpu.pipeline_mode<synchronous>, transform_indices = @transform_2, window_bounds = array<i64: 1, 256>}, {pipeline_mode = #tpu.pipeline_mode<synchronous>, transform_indices = @transform_3, window_bounds = array<i64: 256, 128>}, {pipeline_mode = #tpu.pipeline_mode<synchronous>, transform_indices = @transform_4, window_bounds = array<i64: 1, 128>}, {transform_indices = @transform_5, window_bounds = array<i64: 128, 128>}]} {
    %c0 = arith.constant 0 : index
    %c0_0 = arith.constant 0 : index
    %0 = vector.load %arg1[%c0, %c0_0] : memref<128x773xf32, #tpu.memory_space<vmem>>, vector<128x773xf32>
    %1 = arith.truncf %0 : vector<128x773xf32> to vector<128x773xbf16>
    %c0_1 = arith.constant 0 : index
    %c0_2 = arith.constant 0 : index
    %2 = vector.load %arg2[%c0_1, %c0_2] : memref<773x256xbf16, #tpu.memory_space<vmem>>, vector<773x256xbf16>
    %cst = arith.constant dense<0.000000e+00> : vector<128x256xf32>
    %3 = tpu.matmul %1, %2, %cst {dimension_numbers = #tpu.dot_dimension_numbers<[1], [0], [0], [1], [0, 0, 1, 1], [], []>} : vector<128x773xbf16>, vector<773x256xbf16>, vector<128x256xf32> -> vector<128x256xf32>
    %c0_3 = arith.constant 0 : index
    %c0_4 = arith.constant 0 : index
    %4 = vector.load %arg3[%c0_3, %c0_4] : memref<1x256xf32, #tpu.memory_space<vmem>>, vector<1x256xf32>
    %5 = vector.broadcast %4 : vector<1x256xf32> to vector<128x256xf32>
    %6 = arith.addf %3, %5 : vector<128x256xf32>
    %cst_5 = arith.constant 0.000000e+00 : f32
    %7 = vector.broadcast %cst_5 : f32 to vector<128x256xf32>
    %8 = arith.maximumf %6, %7 : vector<128x256xf32>
    %9 = arith.truncf %8 : vector<128x256xf32> to vector<128x256xbf16>
    %c0_6 = arith.constant 0 : index
    %c0_7 = arith.constant 0 : index
    %10 = vector.load %arg4[%c0_6, %c0_7] : memref<256x128xbf16, #tpu.memory_space<vmem>>, vector<256x128xbf16>
    %cst_8 = arith.constant dense<0.000000e+00> : vector<128x128xf32>
    %11 = tpu.matmul %9, %10, %cst_8 {dimension_numbers = #tpu.dot_dimension_numbers<[1], [0], [0], [1], [0, 0, 1, 1], [], []>} : vector<128x256xbf16>, vector<256x128xbf16>, vector<128x128xf32> -> vector<128x128xf32>
    %c0_9 = arith.constant 0 : index
    %c0_10 = arith.constant 0 : index
    %12 = vector.load %arg5[%c0_9, %c0_10] : memref<1x128xf32, #tpu.memory_space<vmem>>, vector<1x128xf32>
    %13 = vector.broadcast %12 : vector<1x128xf32> to vector<128x128xf32>
    %14 = arith.addf %11, %13 : vector<128x128xf32>
    %c0_11 = arith.constant 0 : index
    %c0_12 = arith.constant 0 : index
    %15 = vector.load %arg6[%c0_11, %c0_12] : memref<128x128xf32, #tpu.memory_space<vmem>>, vector<128x128xf32>
    tpu.vector_store %arg6[%c0_11, %c0_12], %14 {strides = array<i32>} : memref<128x128xf32, #tpu.memory_space<vmem>>, vector<128x128xf32>,
    return
  }
  func.func @transform_0(%arg0: i32) -> (i32, i32) {
    %c0_i32 = arith.constant 0 : i32
    %c0_i32_0 = arith.constant 0 : i32
    return %arg0, %c0_i32 : i32, i32
  }
  func.func @transform_1(%arg0: i32) -> (i32, i32) {
    %c0_i32 = arith.constant 0 : i32
    %c0_i32_0 = arith.constant 0 : i32
    %c0_i32_1 = arith.constant 0 : i32
    return %c0_i32, %c0_i32_0 : i32, i32
  }
  func.func @transform_2(%arg0: i32) -> (i32, i32) {
    %c0_i32 = arith.constant 0 : i32
    %c0_i32_0 = arith.constant 0 : i32
    %c0_i32_1 = arith.constant 0 : i32
    return %c0_i32, %c0_i32_0 : i32, i32
  }
  func.func @transform_3(%arg0: i32) -> (i32, i32) {
    %c0_i32 = arith.constant 0 : i32
    %c0_i32_0 = arith.constant 0 : i32
    %c0_i32_1 = arith.constant 0 : i32
    return %c0_i32, %c0_i32_0 : i32, i32
  }
  func.func @transform_4(%arg0: i32) -> (i32, i32) {
    %c0_i32 = arith.constant 0 : i32
    %c0_i32_0 = arith.constant 0 : i32
    %c0_i32_1 = arith.constant 0 : i32
    return %c0_i32, %c0_i32_0 : i32, i32
  }
  func.func @transform_5(%arg0: i32) -> (i32, i32) {
    %c0_i32 = arith.constant 0 : i32
    %c0_i32_0 = arith.constant 0 : i32
    return %arg0, %c0_i32 : i32, i32
  }
}

</mosaic_0001>

<llo_original>
// kernel: chess_net_forward.1
$region0: #{chess_net_forward.1}
  #allocation0 [shape = 'u32[]', space=smem, size = 0x4, offset = 0x4, fixed_abs, tag = 'smem constant byte address 0x4 - core index']
  #allocation1 [shape = 'u32[72,128]{1,0:T(1,128)}', space=vmem, size = 0x9000, scoped, tag = 'internal scratch']
  %s0 = inlined_call_operand.vmem [shape: f32[512,773], index: 0, kind: input, shape index: {}]
  %s1 = inlined_call_operand.vmem [shape: bf16[773,256], index: 1, kind: input, shape index: {}]
  %s2 = inlined_call_operand.vmem [shape: f32[1,256], index: 2, kind: input, shape index: {}]
  %s3 = inlined_call_operand.vmem [shape: bf16[256,128], index: 3, kind: input, shape index: {}]
  %s4 = inlined_call_operand.vmem [shape: f32[1,128], index: 4, kind: input, shape index: {}]
  %s5 = inlined_call_operand.vmem [shape: f32[512,128], index: 5, kind: output, shape index: {}]
  %s6 = sld [smem:[#allocation0]]
  $region53: #{chess_net_forward.1} parent=0
    _
  %s8 = ssub.s32 1, %s6
  %s9 = scalar_select 0, %s8, %s6
  loop: start=0, step=1, limit=6
  $region2: #{chess_net_forward.1} parent=0 // loop_pre_header
    _
  $region3: #{chess_net_forward.1} parent=0 // loop_header
    %s11 = sphi 0, %s15
    %p12 = scmp.ge.s32.totalorder %s11, 6
    %s21 = sphi 0, %s23
    %s24 = sphi 0, %s21
    %s25 = sphi 0, %s24
    %s41 = sphi 0, %s25
    %s45 = sphi 0, %s45
    %s47 = sphi 0, %s45
    %s48 = sphi 0, %s47
    %s62 = sphi 0, %s48
    %s66 = sphi 0, %s66
    %s68 = sphi 0, %s66
    %s69 = sphi 0, %s68
    %s83 = sphi 0, %s69
    %s87 = sphi 0, %s87
    %s89 = sphi 0, %s87
    %s90 = sphi 0, %s89
    %s104 = sphi 0, %s90
    %s108 = sphi 0, %s108
    %s110 = sphi 0, %s108
    %s111 = sphi 0, %s110
    %s125 = sphi 0, %s111
    %s131 = sphi 0, %s133
    %s134 = sphi 0, %s131
    %s135 = sphi 0, %s134
    %s151 = sphi 0, %s135
  $region4: #{chess_net_forward.1} parent=0 // loop_header_branch
    %14 = sbr.rel (%p12) target = $region8
  $region5: #{chess_net_forward.1} parent=0 // loop_body
    %s16 = ssub.s32 %s11, 1
    %s17 = ssub.s32 %s11, 2
    %s18 = sadd.s32 %s11, 1
    %s19 = ssub.s32 %s11, %s18
    %p20 = scmp.eq.s32.totalorder %s19, 0
    %s22 = sadd.s32 %s21, 1
    %s23 = scalar_select %p20, %s21, %s22
    %p26 = pneg %p20
    %p27 = scmp.eq.s32.totalorder %s11, 3
    %p28 = por %p26, %p27
    %p29 = scmp.ne.s32.totalorder %s21, %s24
    %p30 = scmp.eq.s32.totalorder %s11, 0
    %p31 = por %p29, %p30
    %p32 = scmp.ne.s32.totalorder %s21, %s24
    %p33 = scmp.eq.s32.totalorder %s16, 3
    %p34 = por %p32, %p33
    %p35 = scmp.ne.s32.totalorder %s24, %s25
    %p36 = scmp.eq.s32.totalorder %s16, 0
    %p37 = por %p35, %p36
    %p38 = scmp.ne.s32.totalorder %s24, %s25
    %p39 = scmp.eq.s32.totalorder %s17, 3
    %p40 = por %p38, %p39
    %p42 = scmp.ne.s32.totalorder %s25, %s41
    %p43 = scmp.eq.s32.totalorder %s17, 0
    %p44 = por %p42, %p43
    %s46 = sadd.s32 %s45, 1
    %p49 = scmp.eq.s32.totalorder %s11, 3
    %p50 = scmp.ne.s32.totalorder %s45, %s47
    %p51 = scmp.eq.s32.totalorder %s11, 0
    %p52 = por %p50, %p51
    %p53 = scmp.ne.s32.totalorder %s45, %s47
    %p54 = scmp.eq.s32.totalorder %s16, 3
    %p55 = por %p53, %p54
    %p56 = scmp.ne.s32.totalorder %s47, %s48
    %p57 = scmp.eq.s32.totalorder %s16, 0
    %p58 = por %p56, %p57
    %p59 = scmp.ne.s32.totalorder %s47, %s48
    %p60 = scmp.eq.s32.totalorder %s17, 3
    %p61 = por %p59, %p60
    %p63 = scmp.ne.s32.totalorder %s48, %s62
    %p64 = scmp.eq.s32.totalorder %s17, 0
    %p65 = por %p63, %p64
    %s67 = sadd.s32 %s66, 1
    %p70 = scmp.eq.s32.totalorder %s11, 3
    %p71 = scmp.ne.s32.totalorder %s66, %s68
    %p72 = scmp.eq.s32.totalorder %s11, 0
    %p73 = por %p71, %p72
    %p74 = scmp.ne.s32.totalorder %s66, %s68
    %p75 = scmp.eq.s32.totalorder %s16, 3
    %p76 = por %p74, %p75
    %p77 = scmp.ne.s32.totalorder %s68, %s69
    %p78 = scmp.eq.s32.totalorder %s16, 0
    %p79 = por %p77, %p78
    %p80 = scmp.ne.s32.totalorder %s68, %s69
    %p81 = scmp.eq.s32.totalorder %s17, 3
    %p82 = por %p80, %p81
    %p84 = scmp.ne.s32.totalorder %s69, %s83
    %p85 = scmp.eq.s32.totalorder %s17, 0
    %p86 = por %p84, %p85
    %s88 = sadd.s32 %s87, 1
    %p91 = scmp.eq.s32.totalorder %s11, 3
    %p92 = scmp.ne.s32.totalorder %s87, %s89
    %p93 = scmp.eq.s32.totalorder %s11, 0
    %p94 = por %p92, %p93
    %p95 = scmp.ne.s32.totalorder %s87, %s89
    %p96 = scmp.eq.s32.totalorder %s16, 3
    %p97 = por %p95, %p96
    %p98 = scmp.ne.s32.totalorder %s89, %s90
    %p99 = scmp.eq.s32.totalorder %s16, 0
    %p100 = por %p98, %p99
    %p101 = scmp.ne.s32.totalorder %s89, %s90
    %p102 = scmp.eq.s32.totalorder %s17, 3
    %p103 = por %p101, %p102
    %p105 = scmp.ne.s32.totalorder %s90, %s104
    %p106 = scmp.eq.s32.totalorder %s17, 0
    %p107 = por %p105, %p106
    %s109 = sadd.s32 %s108, 1
    %p112 = scmp.eq.s32.totalorder %s11, 3
    %p113 = scmp.ne.s32.totalorder %s108, %s110
    %p114 = scmp.eq.s32.totalorder %s11, 0
    %p115 = por %p113, %p114
    %p116 = scmp.ne.s32.totalorder %s108, %s110
    %p117 = scmp.eq.s32.totalorder %s16, 3
    %p118 = por %p116, %p117
    %p119 = scmp.ne.s32.totalorder %s110, %s111
    %p120 = scmp.eq.s32.totalorder %s16, 0
    %p121 = por %p119, %p120
    %p122 = scmp.ne.s32.totalorder %s110, %s111
    %p123 = scmp.eq.s32.totalorder %s17, 3
    %p124 = por %p122, %p123
    %p126 = scmp.ne.s32.totalorder %s111, %s125
    %p127 = scmp.eq.s32.totalorder %s17, 0
    %p128 = por %p126, %p127
    %s129 = ssub.s32 %s11, %s18
    %p130 = scmp.eq.s32.totalorder %s129, 0
    %s132 = sadd.s32 %s131, 1
    %s133 = scalar_select %p130, %s131, %s132
    %p136 = pneg %p130
    %p137 = scmp.eq.s32.totalorder %s11, 3
    %p138 = por %p136, %p137
    %p139 = scmp.ne.s32.totalorder %s131, %s134
    %p140 = scmp.eq.s32.totalorder %s11, 0
    %p141 = por %p139, %p140
    %p142 = scmp.ne.s32.totalorder %s131, %s134
    %p143 = scmp.eq.s32.totalorder %s16, 3
    %p144 = por %p142, %p143
    %p145 = scmp.ne.s32.totalorder %s134, %s135
    %p146 = scmp.eq.s32.totalorder %s16, 0
    %p147 = por %p145, %p146
    %p148 = scmp.ne.s32.totalorder %s134, %s135
    %p149 = scmp.eq.s32.totalorder %s17, 3
    %p150 = por %p148, %p149
    %p152 = scmp.ne.s32.totalorder %s135, %s151
    %p153 = scmp.eq.s32.totalorder %s17, 0
    %p154 = por %p152, %p153
    %p155 = scmp.le.s32.totalorder 1, %s11
    %p156 = scmp.lt.s32.totalorder %s11, 5
    %p157 = pnand %p155, %p156
    %p158 = pneg %p157
    // Predicated region
    $region9: #{chess_net_forward.1} parent=5 // pred_check
      _
    $region10: #{chess_net_forward.1} parent=5 // pred_check_branch
      %160 = sbr.rel (%p157) target = $region12
    $region11: #{chess_net_forward.1} parent=5 // pred_region
      %s161 = ssub.s32 %s11, 1
      // Predicated region
      $region13: #{chess_net_forward.1} parent=11 // pred_check
        %p162 = pneg %p58
      $region14: #{chess_net_forward.1} parent=11 // pred_check_branch
        %164 = sbr.rel (%p162) target = $region16
      $region15: #{chess_net_forward.1} parent=11 // pred_region
        _
      $region16: #{chess_net_forward.1} parent=11 // pred_fallthru
        _
      // Predicated region
      $region17: #{chess_net_forward.1} parent=11 // pred_check
        %p165 = pneg %p79
      $region18: #{chess_net_forward.1} parent=11 // pred_check_branch
        %167 = sbr.rel (%p165) target = $region20
      $region19: #{chess_net_forward.1} parent=11 // pred_region
        _
      $region20: #{chess_net_forward.1} parent=11 // pred_fallthru
        _
      // Predicated region
      $region21: #{chess_net_forward.1} parent=11 // pred_check
        %p168 = pneg %p100
      $region22: #{chess_net_forward.1} parent=11 // pred_check_branch
        %170 = sbr.rel (%p168) target = $region24
      $region23: #{chess_net_forward.1} parent=11 // pred_region
        _
      $region24: #{chess_net_forward.1} parent=11 // pred_fallthru
        _
      // Predicated region
      $region25: #{chess_net_forward.1} parent=11 // pred_check
        %p171 = pneg %p121
      $region26: #{chess_net_forward.1} parent=11 // pred_check_branch
        %173 = sbr.rel (%p171) target = $region28
      $region27: #{chess_net_forward.1} parent=11 // pred_region
        _
      $region28: #{chess_net_forward.1} parent=11 // pred_fallthru
        _
    $region12: #{chess_net_forward.1} parent=5 // pred_fallthru
      _
    %p174 = scmp.lt.s32.totalorder %s11, 4
    // Predicated region
    $region29: #{chess_net_forward.1} parent=5 // pred_check
      %p175 = pneg %p174
    $region30: #{chess_net_forward.1} parent=5 // pred_check_branch
      %177 = sbr.rel (%p175) target = $region32
    $region31: #{chess_net_forward.1} parent=5 // pred_region
      // Predicated region
      $region33: #{chess_net_forward.1} parent=31 // pred_check
        %p178 = pneg %p31
      $region34: #{chess_net_forward.1} parent=31 // pred_check_branch
        %180 = sbr.rel (%p178) target = $region36
      $region35: #{chess_net_forward.1} parent=31 // pred_region
        %s181 = smul.u32 16, %s11
        %p182 = scmp.lt.s32.totalorder %s181, 63
        %s183 = scalar_select %p182, %s181, 63
        %s184 = smul.addr %s183, 7
        %s185 = smul.addr %s184, 8
        %s186 = scalar_lea.vmem %s0, %s185
        %s187 = smul.u32 16, %s11
      $region36: #{chess_net_forward.1} parent=31 // pred_fallthru
        _
    $region32: #{chess_net_forward.1} parent=5 // pred_fallthru
      _
    %p188 = scmp.le.s32.totalorder 1, %s11
    %p189 = scmp.lt.s32.totalorder %s11, 5
    %p190 = pnand %p188, %p189
    %p191 = pneg %p190
    // Predicated region
    $region37: #{chess_net_forward.1} parent=5 // pred_check
      _
    $region38: #{chess_net_forward.1} parent=5 // pred_check_branch
      %193 = sbr.rel (%p190) target = $region40
    $region39: #{chess_net_forward.1} parent=5 // pred_region
      %s194 = ssub.s32 %s11, 1
      %s195 = smul.u32 16, %s16
      %p196 = scmp.lt.s32.totalorder %s195, 63
      %s197 = scalar_select %p196, %s195, 63
      %s198 = smul.addr %s197, 7
      %s199 = smul.addr %s198, 8
      %s200 = scalar_lea.vmem %s0, %s199
      %p201 = pneg %p37
      %p202 = pneg %p34
      %p203 = pneg %p58
      %p204 = pneg %p55
      %p205 = pneg %p79
      %p206 = pneg %p76
      %p207 = pneg %p100
      %p208 = pneg %p97
      %p209 = pneg %p121
      %p210 = pneg %p118
      %p211 = pneg %p147
      %p212 = pneg %p144
      %s213 = smul.u32 16, %s16
      %p214 = scmp.lt.s32.totalorder %s213, 63
      %s215 = scalar_select %p214, %s213, 63
      %s216 = smul.addr %s215, 8
      %s217 = scalar_lea.vmem %s5, %s216
      %s218 = smul.u32 16, %s16
      %p219 = scmp.lt.s32.totalorder %s218, 63
      %s220 = scalar_select %p219, %s218, 63
      %s221 = smul.addr %s220, 7
      %s222 = smul.addr %s221, 8
      %s223 = scalar_lea.vmem %s0, %s222
      %s224 = smul.u32 16, %s16
      %s225 = smul.u32 16, %s16
      %p226 = scmp.lt.s32.totalorder %s225, 63
      %s227 = scalar_select %p226, %s225, 63
      %s228 = smul.addr %s227, 8
      %s229 = scalar_lea.vmem %s5, %s228
      %s230 = smul.u32 16, %s16
      %v232 = vld [vmem:[%s223] sm:$0xff]
      %v233 = vld [vmem:[%s223 + $0x8] sm:$0xff]
      %v234 = vld [vmem:[%s223 + $0x10] sm:$0xff]
      %v235 = vld [vmem:[%s223 + $0x18] sm:$0xff]
      %v236 = vld [vmem:[%s223 + $0x20] sm:$0xff]
      %v237 = vld [vmem:[%s223 + $0x28] sm:$0xff]
      %v238 = vld [vmem:[%s223 + $0x30] sm:$0xff]
      %v239 = vld [vmem:[%s223 + $0x38] sm:$0xff]
      %v240 = vld [vmem:[%s223 + $0x40] sm:$0xff]
      %v241 = vld [vmem:[%s223 + $0x48] sm:$0xff]
      %v242 = vld [vmem:[%s223 + $0x50] sm:$0xff]
      %v243 = vld [vmem:[%s223 + $0x58] sm:$0xff]
      %v244 = vld [vmem:[%s223 + $0x60] sm:$0xff]
      %v245 = vld [vmem:[%s223 + $0x68] sm:$0xff]
      %v246 = vld [vmem:[%s223 + $0x70] sm:$0xff]
      %v247 = vld [vmem:[%s223 + $0x78] sm:$0xff]
      %v248 = vld [vmem:[%s223 + $0x80] sm:$0xff]
      %v249 = vld [vmem:[%s223 + $0x88] sm:$0xff]
      %v250 = vld [vmem:[%s223 + $0x90] sm:$0xff]
      %v251 = vld [vmem:[%s223 + $0x98] sm:$0xff]
      %v252 = vld [vmem:[%s223 + $0xa0] sm:$0xff]
      %v253 = vld [vmem:[%s223 + $0xa8] sm:$0xff]
      %v254 = vld [vmem:[%s223 + $0xb0] sm:$0xff]
      %v255 = vld [vmem:[%s223 + $0xb8] sm:$0xff]
      %v256 = vld [vmem:[%s223 + $0xc0] sm:$0xff]
      %v257 = vld [vmem:[%s223 + $0xc8] sm:$0xff]
      %v258 = vld [vmem:[%s223 + $0xd0] sm:$0xff]
      %v259 = vld [vmem:[%s223 + $0xd8] sm:$0xff]
      %v260 = vld [vmem:[%s223 + $0xe0] sm:$0xff]
      %v261 = vld [vmem:[%s223 + $0xe8] sm:$0xff]
      %v262 = vld [vmem:[%s223 + $0xf0] sm:$0xff]
      %v263 = vld [vmem:[%s223 + $0xf8] sm:$0xff]
      %v264 = vld [vmem:[%s223 + $0x100] sm:$0xff]
      %v265 = vld [vmem:[%s223 + $0x108] sm:$0xff]
      %v266 = vld [vmem:[%s223 + $0x110] sm:$0xff]
      %v267 = vld [vmem:[%s223 + $0x118] sm:$0xff]
      %v268 = vld [vmem:[%s223 + $0x120] sm:$0xff]
      %v269 = vld [vmem:[%s223 + $0x128] sm:$0xff]
      %v270 = vld [vmem:[%s223 + $0x130] sm:$0xff]
      %v271 = vld [vmem:[%s223 + $0x138] sm:$0xff]
      %v272 = vld [vmem:[%s223 + $0x140] sm:$0xff]
      %v273 = vld [vmem:[%s223 + $0x148] sm:$0xff]
      %v274 = vld [vmem:[%s223 + $0x150] sm:$0xff]
      %v275 = vld [vmem:[%s223 + $0x158] sm:$0xff]
      %v276 = vld [vmem:[%s223 + $0x160] sm:$0xff]
      %v277 = vld [vmem:[%s223 + $0x168] sm:$0xff]
      %v278 = vld [vmem:[%s223 + $0x170] sm:$0xff]
      %v279 = vld [vmem:[%s223 + $0x178] sm:$0xff]
      %v280 = vld [vmem:[%s223 + $0x180] sm:$0xff]
      %v281 = vld [vmem:[%s223 + $0x188] sm:$0xff]
      %v282 = vld [vmem:[%s223 + $0x190] sm:$0xff]
      %v283 = vld [vmem:[%s223 + $0x198] sm:$0xff]
      %v284 = vld [vmem:[%s223 + $0x1a0] sm:$0xff]
      %v285 = vld [vmem:[%s223 + $0x1a8] sm:$0xff]
      %v286 = vld [vmem:[%s223 + $0x1b0] sm:$0xff]
      %v287 = vld [vmem:[%s223 + $0x1b8] sm:$0xff]
      %v288 = vld [vmem:[%s223 + $0x1c0] sm:$0xff]
      %v289 = vld [vmem:[%s223 + $0x1c8] sm:$0xff]
      %v290 = vld [vmem:[%s223 + $0x1d0] sm:$0xff]
      %v291 = vld [vmem:[%s223 + $0x1d8] sm:$0xff]
      %v292 = vld [vmem:[%s223 + $0x1e0] sm:$0xff]
      %v293 = vld [vmem:[%s223 + $0x1e8] sm:$0xff]
      %v294 = vld [vmem:[%s223 + $0x1f0] sm:$0xff]
      %v295 = vld [vmem:[%s223 + $0x1f8] sm:$0xff]
      %v296 = vld [vmem:[%s223 + $0x200] sm:$0xff]
      %v297 = vld [vmem:[%s223 + $0x208] sm:$0xff]
      %v298 = vld [vmem:[%s223 + $0x210] sm:$0xff]
      %v299 = vld [vmem:[%s223 + $0x218] sm:$0xff]
      %v300 = vld [vmem:[%s223 + $0x220] sm:$0xff]
      %v301 = vld [vmem:[%s223 + $0x228] sm:$0xff]
      %v302 = vld [vmem:[%s223 + $0x230] sm:$0xff]
      %v303 = vld [vmem:[%s223 + $0x238] sm:$0xff]
      %v304 = vld [vmem:[%s223 + $0x240] sm:$0xff]
      %v305 = vld [vmem:[%s223 + $0x248] sm:$0xff]
      %v306 = vld [vmem:[%s223 + $0x250] sm:$0xff]
      %v307 = vld [vmem:[%s223 + $0x258] sm:$0xff]
      %v308 = vld [vmem:[%s223 + $0x260] sm:$0xff]
      %v309 = vld [vmem:[%s223 + $0x268] sm:$0xff]
      %v310 = vld [vmem:[%s223 + $0x270] sm:$0xff]
      %v311 = vld [vmem:[%s223 + $0x278] sm:$0xff]
      %v312 = vld [vmem:[%s223 + $0x280] sm:$0xff]
      %v313 = vld [vmem:[%s223 + $0x288] sm:$0xff]
      %v314 = vld [vmem:[%s223 + $0x290] sm:$0xff]
      %v315 = vld [vmem:[%s223 + $0x298] sm:$0xff]
      %v316 = vld [vmem:[%s223 + $0x2a0] sm:$0xff]
      %v317 = vld [vmem:[%s223 + $0x2a8] sm:$0xff]
      %v318 = vld [vmem:[%s223 + $0x2b0] sm:$0xff]
      %v319 = vld [vmem:[%s223 + $0x2b8] sm:$0xff]
      %v320 = vld [vmem:[%s223 + $0x2c0] sm:$0xff]
      %v321 = vld [vmem:[%s223 + $0x2c8] sm:$0xff]
      %v322 = vld [vmem:[%s223 + $0x2d0] sm:$0xff]
      %v323 = vld [vmem:[%s223 + $0x2d8] sm:$0xff]
      %v324 = vld [vmem:[%s223 + $0x2e0] sm:$0xff]
      %v325 = vld [vmem:[%s223 + $0x2e8] sm:$0xff]
      %v326 = vld [vmem:[%s223 + $0x2f0] sm:$0xff]
      %v327 = vld [vmem:[%s223 + $0x2f8] sm:$0xff]
      %v328 = vld [vmem:[%s223 + $0x300] sm:$0xff]
      %v329 = vld [vmem:[%s223 + $0x308] sm:$0xff]
      %v330 = vld [vmem:[%s223 + $0x310] sm:$0xff]
      %v331 = vld [vmem:[%s223 + $0x318] sm:$0xff]
      %v332 = vld [vmem:[%s223 + $0x320] sm:$0xff]
      %v333 = vld [vmem:[%s223 + $0x328] sm:$0xff]
      %v334 = vld [vmem:[%s223 + $0x330] sm:$0xff]
      %v335 = vld [vmem:[%s223 + $0x338] sm:$0xff]
      %v336 = vld [vmem:[%s223 + $0x340] sm:$0xff]
      %v337 = vld [vmem:[%s223 + $0x348] sm:$0xff]
      %v338 = vld [vmem:[%s223 + $0x350] sm:$0xff]
      %v339 = vld [vmem:[%s223 + $0x358] sm:$0xff]
      %v340 = vld [vmem:[%s223 + $0x360] sm:$0xff]
      %v341 = vld [vmem:[%s223 + $0x368] sm:$0xff]
      %v342 = vld [vmem:[%s223 + $0x370] sm:$0xff]
      %v343 = vld [vmem:[%s223 + $0x378] sm:$0xff]
      %v344 = vpack.c.bf16 %v239, %v232
      %v345 = vpack.c.bf16 %v240, %v233
      %v346 = vpack.c.bf16 %v241, %v234
      %v347 = vpack.c.bf16 %v242, %v235
      %v348 = vpack.c.bf16 %v243, %v236
      %v349 = vpack.c.bf16 %v244, %v237
      %v350 = vpack.c.bf16 %v245, %v238
      %v351 = vpack.c.bf16 %v253, %v246
      %v352 = vpack.c.bf16 %v254, %v247
      %v353 = vpack.c.bf16 %v255, %v248
      %v354 = vpack.c.bf16 %v256, %v249
      %v355 = vpack.c.bf16 %v257, %v250
      %v356 = vpack.c.bf16 %v258, %v251
      %v357 = vpack.c.bf16 %v259, %v252
      %v358 = vpack.c.bf16 %v267, %v260
      %v359 = vpack.c.bf16 %v268, %v261
      %v360 = vpack.c.bf16 %v269, %v262
      %v361 = vpack.c.bf16 %v270, %v263
      %v362 = vpack.c.bf16 %v271, %v264
      %v363 = vpack.c.bf16 %v272, %v265
      %v364 = vpack.c.bf16 %v273, %v266
      %v365 = vpack.c.bf16 %v281, %v274
      %v366 = vpack.c.bf16 %v282, %v275
      %v367 = vpack.c.bf16 %v283, %v276
      %v368 = vpack.c.bf16 %v284, %v277
      %v369 = vpack.c.bf16 %v285, %v278
      %v370 = vpack.c.bf16 %v286, %v279
      %v371 = vpack.c.bf16 %v287, %v280
      %v372 = vpack.c.bf16 %v295, %v288
      %v373 = vpack.c.bf16 %v296, %v289
      %v374 = vpack.c.bf16 %v297, %v290
      %v375 = vpack.c.bf16 %v298, %v291
      %v376 = vpack.c.bf16 %v299, %v292
      %v377 = vpack.c.bf16 %v300, %v293
      %v378 = vpack.c.bf16 %v301, %v294
      %v379 = vpack.c.bf16 %v309, %v302
      %v380 = vpack.c.bf16 %v310, %v303
      %v381 = vpack.c.bf16 %v311, %v304
      %v382 = vpack.c.bf16 %v312, %v305
      %v383 = vpack.c.bf16 %v313, %v306
      %v384 = vpack.c.bf16 %v314, %v307
      %v385 = vpack.c.bf16 %v315, %v308
      %v386 = vpack.c.bf16 %v323, %v316
      %v387 = vpack.c.bf16 %v324, %v317
      %v388 = vpack.c.bf16 %v325, %v318
      %v389 = vpack.c.bf16 %v326, %v319
      %v390 = vpack.c.bf16 %v327, %v320
      %v391 = vpack.c.bf16 %v328, %v321
      %v392 = vpack.c.bf16 %v329, %v322
      %v393 = vpack.c.bf16 %v337, %v330
      %v394 = vpack.c.bf16 %v338, %v331
      %v395 = vpack.c.bf16 %v339, %v332
      %v396 = vpack.c.bf16 %v340, %v333
      %v397 = vpack.c.bf16 %v341, %v334
      %v398 = vpack.c.bf16 %v342, %v335
      %v399 = vpack.c.bf16 %v343, %v336
      %v400 = vld [vmem:[%s1] sm:$0xff]
      %v401 = vld [vmem:[%s1 + $0x8] sm:$0xff]
      %v402 = vld [vmem:[%s1 + $0x10] sm:$0xff]
      %v403 = vld [vmem:[%s1 + $0x18] sm:$0xff]
      %v404 = vld [vmem:[%s1 + $0x20] sm:$0xff]
      %v405 = vld [vmem:[%s1 + $0x28] sm:$0xff]
      %v406 = vld [vmem:[%s1 + $0x30] sm:$0xff]
      %v407 = vld [vmem:[%s1 + $0x38] sm:$0xff]
      %v408 = vld [vmem:[%s1 + $0x40] sm:$0xff]
      %v409 = vld [vmem:[%s1 + $0x48] sm:$0xff]
      %v410 = vld [vmem:[%s1 + $0x50] sm:$0xff]
      %v411 = vld [vmem:[%s1 + $0x58] sm:$0xff]
      %v412 = vld [vmem:[%s1 + $0x60] sm:$0xff]
      %v413 = vld [vmem:[%s1 + $0x68] sm:$0xff]
      %v414 = vld [vmem:[%s1 + $0x70] sm:$0xff]
      %v415 = vld [vmem:[%s1 + $0x78] sm:$0xff]
      %v416 = vld [vmem:[%s1 + $0x80] sm:$0xff]
      %v417 = vld [vmem:[%s1 + $0x88] sm:$0xff]
      %v418 = vld [vmem:[%s1 + $0x90] sm:$0xff]
      %v419 = vld [vmem:[%s1 + $0x98] sm:$0xff]
      %v420 = vld [vmem:[%s1 + $0xa0] sm:$0xff]
      %v421 = vld [vmem:[%s1 + $0xa8] sm:$0xff]
      %v422 = vld [vmem:[%s1 + $0xb0] sm:$0xff]
      %v423 = vld [vmem:[%s1 + $0xb8] sm:$0xff]
      %v424 = vld [vmem:[%s1 + $0xc0] sm:$0xff]
      %v425 = vld [vmem:[%s1 + $0xc8] sm:$0xff]
      %v426 = vld [vmem:[%s1 + $0xd0] sm:$0xff]
      %v427 = vld [vmem:[%s1 + $0xd8] sm:$0xff]
      %v428 = vld [vmem:[%s1 + $0xe0] sm:$0xff]
      %v429 = vld [vmem:[%s1 + $0xe8] sm:$0xff]
      %v430 = vld [vmem:[%s1 + $0xf0] sm:$0xff]
      %v431 = vld [vmem:[%s1 + $0xf8] sm:$0xff]
      %v432 = vld [vmem:[%s1 + $0x100] sm:$0xff]
      %v433 = vld [vmem:[%s1 + $0x108] sm:$0xff]
      %v434 = vld [vmem:[%s1 + $0x110] sm:$0xff]
      %v435 = vld [vmem:[%s1 + $0x118] sm:$0xff]
      %v436 = vld [vmem:[%s1 + $0x120] sm:$0xff]
      %v437 = vld [vmem:[%s1 + $0x128] sm:$0xff]
      %v438 = vld [vmem:[%s1 + $0x130] sm:$0xff]
      %v439 = vld [vmem:[%s1 + $0x138] sm:$0xff]
      %v440 = vld [vmem:[%s1 + $0x140] sm:$0xff]
      %v441 = vld [vmem:[%s1 + $0x148] sm:$0xff]
      %v442 = vld [vmem:[%s1 + $0x150] sm:$0xff]
      %v443 = vld [vmem:[%s1 + $0x158] sm:$0xff]
      %v444 = vld [vmem:[%s1 + $0x160] sm:$0xff]
      %v445 = vld [vmem:[%s1 + $0x168] sm:$0xff]
      %v446 = vld [vmem:[%s1 + $0x170] sm:$0xff]
      %v447 = vld [vmem:[%s1 + $0x178] sm:$0xff]
      %v448 = vld [vmem:[%s1 + $0x180] sm:$0xff]
      %v449 = vld [vmem:[%s1 + $0x188] sm:$0xff]
      %v450 = vld [vmem:[%s1 + $0x190] sm:$0xff]
      %v451 = vld [vmem:[%s1 + $0x198] sm:$0xff]
      %v452 = vld [vmem:[%s1 + $0x1a0] sm:$0xff]
      %v453 = vld [vmem:[%s1 + $0x1a8] sm:$0xff]
      %v454 = vld [vmem:[%s1 + $0x1b0] sm:$0xff]
      %v455 = vld [vmem:[%s1 + $0x1b8] sm:$0xff]
      %v456 = vld [vmem:[%s1 + $0x1c0] sm:$0xff]
      %v457 = vld [vmem:[%s1 + $0x1c8] sm:$0xff]
      %v458 = vld [vmem:[%s1 + $0x1d0] sm:$0xff]
      %v459 = vld [vmem:[%s1 + $0x1d8] sm:$0xff]
      %v460 = vld [vmem:[%s1 + $0x1e0] sm:$0xff]
      %v461 = vld [vmem:[%s1 + $0x1e8] sm:$0xff]
      %v462 = vld [vmem:[%s1 + $0x1f0] sm:$0xff]
      %v463 = vld [vmem:[%s1 + $0x1f8] sm:$0xff]
      %v464 = vld [vmem:[%s1 + $0x200] sm:$0xff]
      %v465 = vld [vmem:[%s1 + $0x208] sm:$0xff]
      %v466 = vld [vmem:[%s1 + $0x210] sm:$0xff]
      %v467 = vld [vmem:[%s1 + $0x218] sm:$0xff]
      %v468 = vld [vmem:[%s1 + $0x220] sm:$0xff]
      %v469 = vld [vmem:[%s1 + $0x228] sm:$0xff]
      %v470 = vld [vmem:[%s1 + $0x230] sm:$0xff]
      %v471 = vld [vmem:[%s1 + $0x238] sm:$0xff]
      %v472 = vld [vmem:[%s1 + $0x240] sm:$0xff]
      %v473 = vld [vmem:[%s1 + $0x248] sm:$0xff]
      %v474 = vld [vmem:[%s1 + $0x250] sm:$0xff]
      %v475 = vld [vmem:[%s1 + $0x258] sm:$0xff]
      %v476 = vld [vmem:[%s1 + $0x260] sm:$0xff]
      %v477 = vld [vmem:[%s1 + $0x268] sm:$0xff]
      %v478 = vld [vmem:[%s1 + $0x270] sm:$0xff]
      %v479 = vld [vmem:[%s1 + $0x278] sm:$0xff]
      %v480 = vld [vmem:[%s1 + $0x280] sm:$0xff]
      %v481 = vld [vmem:[%s1 + $0x288] sm:$0xff]
      %v482 = vld [vmem:[%s1 + $0x290] sm:$0xff]
      %v483 = vld [vmem:[%s1 + $0x298] sm:$0xff]
      %v484 = vld [vmem:[%s1 + $0x2a0] sm:$0xff]
      %v485 = vld [vmem:[%s1 + $0x2a8] sm:$0xff]
      %v486 = vld [vmem:[%s1 + $0x2b0] sm:$0xff]
      %v487 = vld [vmem:[%s1 + $0x2b8] sm:$0xff]
      %v488 = vld [vmem:[%s1 + $0x2c0] sm:$0xff]
      %v489 = vld [vmem:[%s1 + $0x2c8] sm:$0xff]
      %v490 = vld [vmem:[%s1 + $0x2d0] sm:$0xff]
      %v491 = vld [vmem:[%s1 + $0x2d8] sm:$0xff]
      %v492 = vld [vmem:[%s1 + $0x2e0] sm:$0xff]
      %v493 = vld [vmem:[%s1 + $0x2e8] sm:$0xff]
      %v494 = vld [vmem:[%s1 + $0x2f0] sm:$0xff]
      %v495 = vld [vmem:[%s1 + $0x2f8] sm:$0xff]
      %v496 = vld [vmem:[%s1 + $0x300] sm:$0x77]
      %v497 = vld [vmem:[%s2] sm:$0x3]
      %v499 = vperm.slane %v497, 0
      %v500 = vperm.slane %v497, 1
      %v600 = vunpack.c.l.b16 %v400
      %v601 = vunpack.c.h.b16 %v400
      %v602 = vunpack.c.l.b16 %v401
      %v603 = vunpack.c.h.b16 %v401
      %v604 = vunpack.c.l.b16 %v402
      %v605 = vunpack.c.h.b16 %v402
      %v606 = vunpack.c.l.b16 %v403
      %v607 = vunpack.c.h.b16 %v403
      %v608 = vunpack.c.l.b16 %v404
      %v609 = vunpack.c.h.b16 %v404
      %v610 = vunpack.c.l.b16 %v405
      %v611 = vunpack.c.h.b16 %v405
      %v612 = vunpack.c.l.b16 %v406
      %v613 = vunpack.c.h.b16 %v406
      %v614 = vunpack.c.l.b16 %v407
      %v615 = vunpack.c.h.b16 %v407
      %v616 = vunpack.c.l.b16 %v408
      %v617 = vunpack.c.h.b16 %v408
      %v618 = vunpack.c.l.b16 %v409
      %v619 = vunpack.c.h.b16 %v409
      %v620 = vunpack.c.l.b16 %v410
      %v621 = vunpack.c.h.b16 %v410
      %v622 = vunpack.c.l.b16 %v411
      %v623 = vunpack.c.h.b16 %v411
      %v624 = vunpack.c.l.b16 %v412
      %v625 = vunpack.c.h.b16 %v412
      %v626 = vunpack.c.l.b16 %v413
      %v627 = vunpack.c.h.b16 %v413
      %v628 = vunpack.c.l.b16 %v414
      %v629 = vunpack.c.h.b16 %v414
      %v630 = vunpack.c.l.b16 %v415
      %v631 = vunpack.c.h.b16 %v415
      %v632 = vunpack.c.l.b16 %v416
      %v633 = vunpack.c.h.b16 %v416
      %v634 = vunpack.c.l.b16 %v417
      %v635 = vunpack.c.h.b16 %v417
      %v636 = vunpack.c.l.b16 %v418
      %v637 = vunpack.c.h.b16 %v418
      %v638 = vunpack.c.l.b16 %v419
      %v639 = vunpack.c.h.b16 %v419
      %v640 = vunpack.c.l.b16 %v420
      %v641 = vunpack.c.h.b16 %v420
      %v642 = vunpack.c.l.b16 %v421
      %v643 = vunpack.c.h.b16 %v421
      %v644 = vunpack.c.l.b16 %v422
      %v645 = vunpack.c.h.b16 %v422
      %v646 = vunpack.c.l.b16 %v423
      %v647 = vunpack.c.h.b16 %v423
      %v648 = vunpack.c.l.b16 %v424
      %v649 = vunpack.c.h.b16 %v424
      %v650 = vunpack.c.l.b16 %v425
      %v651 = vunpack.c.h.b16 %v425
      %v652 = vunpack.c.l.b16 %v426
      %v653 = vunpack.c.h.b16 %v426
      %v654 = vunpack.c.l.b16 %v427
      %v655 = vunpack.c.h.b16 %v427
      %v656 = vunpack.c.l.b16 %v428
      %v657 = vunpack.c.h.b16 %v428
      %v658 = vunpack.c.l.b16 %v429
      %v659 = vunpack.c.h.b16 %v429
      %v660 = vunpack.c.l.b16 %v430
      %v661 = vunpack.c.h.b16 %v430
      %v662 = vunpack.c.l.b16 %v431
      %v663 = vunpack.c.h.b16 %v431
      %v664 = vunpack.c.l.b16 %v432
      %v665 = vunpack.c.h.b16 %v432
      %v666 = vunpack.c.l.b16 %v433
      %v667 = vunpack.c.h.b16 %v433
      %v668 = vunpack.c.l.b16 %v434
      %v669 = vunpack.c.h.b16 %v434
      %v670 = vunpack.c.l.b16 %v435
      %v671 = vunpack.c.h.b16 %v435
      %v672 = vunpack.c.l.b16 %v436
      %v673 = vunpack.c.h.b16 %v436
      %v674 = vunpack.c.l.b16 %v437
      %v675 = vunpack.c.h.b16 %v437
      %v676 = vunpack.c.l.b16 %v438
      %v677 = vunpack.c.h.b16 %v438
      %v678 = vunpack.c.l.b16 %v439
      %v679 = vunpack.c.h.b16 %v439
      %v680 = vunpack.c.l.b16 %v440
      %v681 = vunpack.c.h.b16 %v440
      %v682 = vunpack.c.l.b16 %v441
      %v683 = vunpack.c.h.b16 %v441
      %v684 = vunpack.c.l.b16 %v442
      %v685 = vunpack.c.h.b16 %v442
      %v686 = vunpack.c.l.b16 %v443
      %v687 = vunpack.c.h.b16 %v443
      %v688 = vunpack.c.l.b16 %v444
      %v689 = vunpack.c.h.b16 %v444
      %v690 = vunpack.c.l.b16 %v445
      %v691 = vunpack.c.h.b16 %v445
      %v692 = vunpack.c.l.b16 %v446
      %v693 = vunpack.c.h.b16 %v446
      %v694 = vunpack.c.l.b16 %v447
      %v695 = vunpack.c.h.b16 %v447
      %v696 = vunpack.c.l.b16 %v448
      %v697 = vunpack.c.h.b16 %v448
      %v698 = vunpack.c.l.b16 %v449
      %v699 = vunpack.c.h.b16 %v449
      %v700 = vunpack.c.l.b16 %v450
      %v701 = vunpack.c.h.b16 %v450
      %v702 = vunpack.c.l.b16 %v451
      %v703 = vunpack.c.h.b16 %v451
      %v704 = vunpack.c.l.b16 %v452
      %v705 = vunpack.c.h.b16 %v452
      %v706 = vunpack.c.l.b16 %v453
      %v707 = vunpack.c.h.b16 %v453
      %v708 = vunpack.c.l.b16 %v454
      %v709 = vunpack.c.h.b16 %v454
      %v710 = vunpack.c.l.b16 %v455
      %v711 = vunpack.c.h.b16 %v455
      %v712 = vunpack.c.l.b16 %v456
      %v713 = vunpack.c.h.b16 %v456
      %v714 = vunpack.c.l.b16 %v457
      %v715 = vunpack.c.h.b16 %v457
      %v716 = vunpack.c.l.b16 %v458
      %v717 = vunpack.c.h.b16 %v458
      %v718 = vunpack.c.l.b16 %v459
      %v719 = vunpack.c.h.b16 %v459
      %v720 = vunpack.c.l.b16 %v460
      %v721 = vunpack.c.h.b16 %v460
      %v722 = vunpack.c.l.b16 %v461
      %v723 = vunpack.c.h.b16 %v461
      %v724 = vunpack.c.l.b16 %v462
      %v725 = vunpack.c.h.b16 %v462
      %v726 = vunpack.c.l.b16 %v463
      %v727 = vunpack.c.h.b16 %v463
      %v728 = vunpack.c.l.b16 %v464
      %v729 = vunpack.c.h.b16 %v464
      %v730 = vunpack.c.l.b16 %v465
      %v731 = vunpack.c.h.b16 %v465
      %v732 = vunpack.c.l.b16 %v466
      %v733 = vunpack.c.h.b16 %v466
      %v734 = vunpack.c.l.b16 %v467
      %v735 = vunpack.c.h.b16 %v467
      %v736 = vunpack.c.l.b16 %v468
      %v737 = vunpack.c.h.b16 %v468
      %v738 = vunpack.c.l.b16 %v469
      %v739 = vunpack.c.h.b16 %v469
      %v740 = vunpack.c.l.b16 %v470
      %v741 = vunpack.c.h.b16 %v470
      %v742 = vunpack.c.l.b16 %v471
      %v743 = vunpack.c.h.b16 %v471
      %v744 = vunpack.c.l.b16 %v472
      %v745 = vunpack.c.h.b16 %v472
      %v746 = vunpack.c.l.b16 %v473
      %v747 = vunpack.c.h.b16 %v473
      %v748 = vunpack.c.l.b16 %v474
      %v749 = vunpack.c.h.b16 %v474
      %v750 = vunpack.c.l.b16 %v475
      %v751 = vunpack.c.h.b16 %v475
      %v752 = vunpack.c.l.b16 %v476
      %v753 = vunpack.c.h.b16 %v476
      %v754 = vunpack.c.l.b16 %v477
      %v755 = vunpack.c.h.b16 %v477
      %v756 = vunpack.c.l.b16 %v478
      %v757 = vunpack.c.h.b16 %v478
      %v758 = vunpack.c.l.b16 %v479
      %v759 = vunpack.c.h.b16 %v479
      %v760 = vunpack.c.l.b16 %v480
      %v761 = vunpack.c.h.b16 %v480
      %v762 = vunpack.c.l.b16 %v481
      %v763 = vunpack.c.h.b16 %v481
      %v764 = vunpack.c.l.b16 %v482
      %v765 = vunpack.c.h.b16 %v482
      %v766 = vunpack.c.l.b16 %v483
      %v767 = vunpack.c.h.b16 %v483
      %v768 = vunpack.c.l.b16 %v484
      %v769 = vunpack.c.h.b16 %v484
      %v770 = vunpack.c.l.b16 %v485
      %v771 = vunpack.c.h.b16 %v485
      %v772 = vunpack.c.l.b16 %v486
      %v773 = vunpack.c.h.b16 %v486
      %v774 = vunpack.c.l.b16 %v487
      %v775 = vunpack.c.h.b16 %v487
      %v776 = vunpack.c.l.b16 %v488
      %v777 = vunpack.c.h.b16 %v488
      %v778 = vunpack.c.l.b16 %v489
      %v779 = vunpack.c.h.b16 %v489
      %v780 = vunpack.c.l.b16 %v490
      %v781 = vunpack.c.h.b16 %v490
      %v782 = vunpack.c.l.b16 %v491
      %v783 = vunpack.c.h.b16 %v491
      %v784 = vunpack.c.l.b16 %v492
      %v785 = vunpack.c.h.b16 %v492
      %v786 = vunpack.c.l.b16 %v493
      %v787 = vunpack.c.h.b16 %v493
      %v788 = vunpack.c.l.b16 %v494
      %v789 = vunpack.c.h.b16 %v494
      %v790 = vunpack.c.l.b16 %v495
      %v791 = vunpack.c.h.b16 %v495
      %v792 = vunpack.c.l.b16 %v496
      %v793 = vunpack.c.h.b16 %v496
      %v794 = vpack.c.b16 %v602, %v600
      %v795 = vpack.c.b16 %v603, %v601
      %v796 = vpack.c.b16 %v606, %v604
      %v797 = vpack.c.b16 %v607, %v605
      %v798 = vpack.c.b16 %v610, %v608
      %v799 = vpack.c.b16 %v611, %v609
      %v800 = vpack.c.b16 %v614, %v612
      %v801 = vpack.c.b16 %v615, %v613
      %v802 = vpack.c.b16 %v618, %v616
      %v803 = vpack.c.b16 %v619, %v617
      %v804 = vpack.c.b16 %v622, %v620
      %v805 = vpack.c.b16 %v623, %v621
      %v806 = vpack.c.b16 %v626, %v624
      %v807 = vpack.c.b16 %v627, %v625
      %v808 = vpack.c.b16 %v630, %v628
      %v809 = vpack.c.b16 %v631, %v629
      %v810 = vpack.c.b16 %v634, %v632
      %v811 = vpack.c.b16 %v635, %v633
      %v812 = vpack.c.b16 %v638, %v636
      %v813 = vpack.c.b16 %v639, %v637
      %v814 = vpack.c.b16 %v642, %v640
      %v815 = vpack.c.b16 %v643, %v641
      %v816 = vpack.c.b16 %v646, %v644
      %v817 = vpack.c.b16 %v647, %v645
      %v818 = vpack.c.b16 %v650, %v648
      %v819 = vpack.c.b16 %v651, %v649
      %v820 = vpack.c.b16 %v654, %v652
      %v821 = vpack.c.b16 %v655, %v653
      %v822 = vpack.c.b16 %v658, %v656
      %v823 = vpack.c.b16 %v659, %v657
      %v824 = vpack.c.b16 %v662, %v660
      %v825 = vpack.c.b16 %v663, %v661
      %v826 = vpack.c.b16 %v666, %v664
      %v827 = vpack.c.b16 %v667, %v665
      %v828 = vpack.c.b16 %v670, %v668
      %v829 = vpack.c.b16 %v671, %v669
      %v830 = vpack.c.b16 %v674, %v672
      %v831 = vpack.c.b16 %v675, %v673
      %v832 = vpack.c.b16 %v678, %v676
      %v833 = vpack.c.b16 %v679, %v677
      %v834 = vpack.c.b16 %v682, %v680
      %v835 = vpack.c.b16 %v683, %v681
      %v836 = vpack.c.b16 %v686, %v684
      %v837 = vpack.c.b16 %v687, %v685
      %v838 = vpack.c.b16 %v690, %v688
      %v839 = vpack.c.b16 %v691, %v689
      %v840 = vpack.c.b16 %v694, %v692
      %v841 = vpack.c.b16 %v695, %v693
      %v842 = vpack.c.b16 %v698, %v696
      %v843 = vpack.c.b16 %v699, %v697
      %v844 = vpack.c.b16 %v702, %v700
      %v845 = vpack.c.b16 %v703, %v701
      %v846 = vpack.c.b16 %v706, %v704
      %v847 = vpack.c.b16 %v707, %v705
      %v848 = vpack.c.b16 %v710, %v708
      %v849 = vpack.c.b16 %v711, %v709
      %v850 = vpack.c.b16 %v714, %v712
      %v851 = vpack.c.b16 %v715, %v713
      %v852 = vpack.c.b16 %v718, %v716
      %v853 = vpack.c.b16 %v719, %v717
      %v854 = vpack.c.b16 %v722, %v720
      %v855 = vpack.c.b16 %v723, %v721
      %v856 = vpack.c.b16 %v726, %v724
      %v857 = vpack.c.b16 %v727, %v725
      %v858 = vpack.c.b16 %v730, %v728
      %v859 = vpack.c.b16 %v731, %v729
      %v860 = vpack.c.b16 %v734, %v732
      %v861 = vpack.c.b16 %v735, %v733
      %v862 = vpack.c.b16 %v738, %v736
      %v863 = vpack.c.b16 %v739, %v737
      %v864 = vpack.c.b16 %v742, %v740
      %v865 = vpack.c.b16 %v743, %v741
      %v866 = vpack.c.b16 %v746, %v744
      %v867 = vpack.c.b16 %v747, %v745
      %v868 = vpack.c.b16 %v750, %v748
      %v869 = vpack.c.b16 %v751, %v749
      %v870 = vpack.c.b16 %v754, %v752
      %v871 = vpack.c.b16 %v755, %v753
      %v872 = vpack.c.b16 %v758, %v756
      %v873 = vpack.c.b16 %v759, %v757
      %v874 = vpack.c.b16 %v762, %v760
      %v875 = vpack.c.b16 %v763, %v761
      %v876 = vpack.c.b16 %v766, %v764
      %v877 = vpack.c.b16 %v767, %v765
      %v878 = vpack.c.b16 %v770, %v768
      %v879 = vpack.c.b16 %v771, %v769
      %v880 = vpack.c.b16 %v774, %v772
      %v881 = vpack.c.b16 %v775, %v773
      %v882 = vpack.c.b16 %v778, %v776
      %v883 = vpack.c.b16 %v779, %v777
      %v884 = vpack.c.b16 %v782, %v780
      %v885 = vpack.c.b16 %v783, %v781
      %v886 = vpack.c.b16 %v786, %v784
      %v887 = vpack.c.b16 %v787, %v785
      %v888 = vpack.c.b16 %v790, %v788
      %v889 = vpack.c.b16 %v791, %v789
      %v890 = vpack.c.b16 %v792, %v792
      %v891 = vpack.c.b16 %v793, %v793
      %vm988 = vcmask 39936
      %v990 = vsel %vm988, %v350, 0
      %v993 = vsel %vm988, %v357, 0
      %v996 = vsel %vm988, %v364, 0
      %v999 = vsel %vm988, %v371, 0
      %v1002 = vsel %vm988, %v378, 0
      %v1005 = vsel %vm988, %v385, 0
      %v1008 = vsel %vm988, %v392, 0
      %v1011 = vsel %vm988, %v399, 0
      %vm1013 = vcmask 1041408
      %vm1014 = vcmask 1042432
      %v1015 = vsel %vm1013, 4294967295, 65535
      %v1016 = vsel %vm1014, %v1015, 0
      %v1018 = vand.u32 %v890, %v1016
      %v1021 = vand.u32 %v891, %v1016
      %1023 = vmatpush.bf16.msra.mxu0 %v808
      %1024 = vmatpush.bf16.msra.mxu0 %v806
      %1025 = vmatpush.bf16.msra.mxu0 %v804
      %1026 = vmatpush.bf16.msra.mxu0 %v802
      %1027 = vmatpush.bf16.msra.mxu0 %v800
      %1028 = vmatpush.bf16.msra.mxu0 %v798
      %1029 = vmatpush.bf16.msra.mxu0 %v796
      %1030 = vmatpush.bf16.msra.mxu0 %v794
      %1031 = vmatmul.bf16.gmra.mxu0 %v344
      %v1032 = vpop.f32.mrf.mxu0
      %v1033 = vadd.f32 %v499, %v1032
      %v1034 = vpop.f32.mrf.mxu0
      %v1035 = vadd.f32 %v499, %v1034
      %1036 = vmatmul.bf16.gmra.mxu0 %v351
      %v1037 = vpop.f32.mrf.mxu0
      %v1038 = vadd.f32 %v499, %v1037
      %v1039 = vpop.f32.mrf.mxu0
      %v1040 = vadd.f32 %v499, %v1039
      %1041 = vmatmul.bf16.gmra.mxu0 %v358
      %v1042 = vpop.f32.mrf.mxu0
      %v1043 = vadd.f32 %v499, %v1042
      %v1044 = vpop.f32.mrf.mxu0
      %v1045 = vadd.f32 %v499, %v1044
      %1046 = vmatmul.bf16.gmra.mxu0 %v365
      %v1047 = vpop.f32.mrf.mxu0
      %v1048 = vadd.f32 %v499, %v1047
      %v1049 = vpop.f32.mrf.mxu0
      %v1050 = vadd.f32 %v499, %v1049
      %1051 = vmatmul.bf16.gmra.mxu0 %v372
      %v1052 = vpop.f32.mrf.mxu0
      %v1053 = vadd.f32 %v499, %v1052
      %v1054 = vpop.f32.mrf.mxu0
      %v1055 = vadd.f32 %v499, %v1054
      %1056 = vmatmul.bf16.gmra.mxu0 %v379
      %v1057 = vpop.f32.mrf.mxu0
      %v1058 = vadd.f32 %v499, %v1057
      %v1059 = vpop.f32.mrf.mxu0
      %v1060 = vadd.f32 %v499, %v1059
      %1061 = vmatmul.bf16.gmra.mxu0 %v386
      %v1062 = vpop.f32.mrf.mxu0
      %v1063 = vadd.f32 %v499, %v1062
      %v1064 = vpop.f32.mrf.mxu0
      %v1065 = vadd.f32 %v499, %v1064
      %1066 = vmatmul.bf16.gmra.mxu0 %v393
      %v1067 = vpop.f32.mrf.mxu0
      %v1068 = vadd.f32 %v499, %v1067
      %v1069 = vpop.f32.mrf.mxu0
      %v1070 = vadd.f32 %v499, %v1069
      %1071 = vdwg.mxu0
      %1072 = vmatpush.bf16.msra.mxu0 %v824
      %1073 = vmatpush.bf16.msra.mxu0 %v822
      %1074 = vmatpush.bf16.msra.mxu0 %v820
      %1075 = vmatpush.bf16.msra.mxu0 %v818
      %1076 = vmatpush.bf16.msra.mxu0 %v816
      %1077 = vmatpush.bf16.msra.mxu0 %v814
      %1078 = vmatpush.bf16.msra.mxu0 %v812
      %1079 = vmatpush.bf16.msra.mxu0 %v810
      %1080 = vmatmul.bf16.gmra.mxu0 %v345
      %v1081 = vpop.f32.mrf.mxu0
      %v1082 = vadd.f32 %v1033, %v1081
      %v1083 = vpop.f32.mrf.mxu0
      %v1084 = vadd.f32 %v1035, %v1083
      %1085 = vmatmul.bf16.gmra.mxu0 %v352
      %v1086 = vpop.f32.mrf.mxu0
      %v1087 = vadd.f32 %v1038, %v1086
      %v1088 = vpop.f32.mrf.mxu0
      %v1089 = vadd.f32 %v1040, %v1088
      %1090 = vmatmul.bf16.gmra.mxu0 %v359
      %v1091 = vpop.f32.mrf.mxu0
      %v1092 = vadd.f32 %v1043, %v1091
      %v1093 = vpop.f32.mrf.mxu0
      %v1094 = vadd.f32 %v1045, %v1093
      %1095 = vmatmul.bf16.gmra.mxu0 %v366
      %v1096 = vpop.f32.mrf.mxu0
      %v1097 = vadd.f32 %v1048, %v1096
      %v1098 = vpop.f32.mrf.mxu0
      %v1099 = vadd.f32 %v1050, %v1098
      %1100 = vmatmul.bf16.gmra.mxu0 %v373
      %v1101 = vpop.f32.mrf.mxu0
      %v1102 = vadd.f32 %v1053, %v1101
      %v1103 = vpop.f32.mrf.mxu0
      %v1104 = vadd.f32 %v1055, %v1103
      %1105 = vmatmul.bf16.gmra.mxu0 %v380
      %v1106 = vpop.f32.mrf.mxu0
      %v1107 = vadd.f32 %v1058, %v1106
      %v1108 = vpop.f32.mrf.mxu0
      %v1109 = vadd.f32 %v1060, %v1108
      %1110 = vmatmul.bf16.gmra.mxu0 %v387
      %v1111 = vpop.f32.mrf.mxu0
      %v1112 = vadd.f32 %v1063, %v1111
      %v1113 = vpop.f32.mrf.mxu0
      %v1114 = vadd.f32 %v1065, %v1113
      %1115 = vmatmul.bf16.gmra.mxu0 %v394
      %v1116 = vpop.f32.mrf.mxu0
      %v1117 = vadd.f32 %v1068, %v1116
      %v1118 = vpop.f32.mrf.mxu0
      %v1119 = vadd.f32 %v1070, %v1118
      %1120 = vdwg.mxu0
      %1121 = vmatpush.bf16.msra.mxu0 %v840
      %1122 = vmatpush.bf16.msra.mxu0 %v838
      %1123 = vmatpush.bf16.msra.mxu0 %v836
      %1124 = vmatpush.bf16.msra.mxu0 %v834
      %1125 = vmatpush.bf16.msra.mxu0 %v832
      %1126 = vmatpush.bf16.msra.mxu0 %v830
      %1127 = vmatpush.bf16.msra.mxu0 %v828
      %1128 = vmatpush.bf16.msra.mxu0 %v826
      %1129 = vmatmul.bf16.gmra.mxu0 %v346
      %v1130 = vpop.f32.mrf.mxu0
      %v1131 = vadd.f32 %v1082, %v1130
      %v1132 = vpop.f32.mrf.mxu0
      %v1133 = vadd.f32 %v1084, %v1132
      %1134 = vmatmul.bf16.gmra.mxu0 %v353
      %v1135 = vpop.f32.mrf.mxu0
      %v1136 = vadd.f32 %v1087, %v1135
      %v1137 = vpop.f32.mrf.mxu0
      %v1138 = vadd.f32 %v1089, %v1137
      %1139 = vmatmul.bf16.gmra.mxu0 %v360
      %v1140 = vpop.f32.mrf.mxu0
      %v1141 = vadd.f32 %v1092, %v1140
      %v1142 = vpop.f32.mrf.mxu0
      %v1143 = vadd.f32 %v1094, %v1142
      %1144 = vmatmul.bf16.gmra.mxu0 %v367
      %v1145 = vpop.f32.mrf.mxu0
      %v1146 = vadd.f32 %v1097, %v1145
      %v1147 = vpop.f32.mrf.mxu0
      %v1148 = vadd.f32 %v1099, %v1147
      %1149 = vmatmul.bf16.gmra.mxu0 %v374
      %v1150 = vpop.f32.mrf.mxu0
      %v1151 = vadd.f32 %v1102, %v1150
      %v1152 = vpop.f32.mrf.mxu0
      %v1153 = vadd.f32 %v1104, %v1152
      %1154 = vmatmul.bf16.gmra.mxu0 %v381
      %v1155 = vpop.f32.mrf.mxu0
      %v1156 = vadd.f32 %v1107, %v1155
      %v1157 = vpop.f32.mrf.mxu0
      %v1158 = vadd.f32 %v1109, %v1157
      %1159 = vmatmul.bf16.gmra.mxu0 %v388
      %v1160 = vpop.f32.mrf.mxu0
      %v1161 = vadd.f32 %v1112, %v1160
      %v1162 = vpop.f32.mrf.mxu0
      %v1163 = vadd.f32 %v1114, %v1162
      %1164 = vmatmul.bf16.gmra.mxu0 %v395
      %v1165 = vpop.f32.mrf.mxu0
      %v1166 = vadd.f32 %v1117, %v1165
      %v1167 = vpop.f32.mrf.mxu0
      %v1168 = vadd.f32 %v1119, %v1167
      %1169 = vdwg.mxu0
      %1170 = vmatpush.bf16.msra.mxu0 %v856
      %1171 = vmatpush.bf16.msra.mxu0 %v854
      %1172 = vmatpush.bf16.msra.mxu0 %v852
      %1173 = vmatpush.bf16.msra.mxu0 %v850
      %1174 = vmatpush.bf16.msra.mxu0 %v848
      %1175 = vmatpush.bf16.msra.mxu0 %v846
      %1176 = vmatpush.bf16.msra.mxu0 %v844
      %1177 = vmatpush.bf16.msra.mxu0 %v842
      %1178 = vmatmul.bf16.gmra.mxu0 %v347
      %v1179 = vpop.f32.mrf.mxu0
      %v1180 = vadd.f32 %v1131, %v1179
      %v1181 = vpop.f32.mrf.mxu0
      %v1182 = vadd.f32 %v1133, %v1181
      %1183 = vmatmul.bf16.gmra.mxu0 %v354
      %v1184 = vpop.f32.mrf.mxu0
      %v1185 = vadd.f32 %v1136, %v1184
      %v1186 = vpop.f32.mrf.mxu0
      %v1187 = vadd.f32 %v1138, %v1186
      %1188 = vmatmul.bf16.gmra.mxu0 %v361
      %v1189 = vpop.f32.mrf.mxu0
      %v1190 = vadd.f32 %v1141, %v1189
      %v1191 = vpop.f32.mrf.mxu0
      %v1192 = vadd.f32 %v1143, %v1191
      %1193 = vmatmul.bf16.gmra.mxu0 %v368
      %v1194 = vpop.f32.mrf.mxu0
      %v1195 = vadd.f32 %v1146, %v1194
      %v1196 = vpop.f32.mrf.mxu0
      %v1197 = vadd.f32 %v1148, %v1196
      %1198 = vmatmul.bf16.gmra.mxu0 %v375
      %v1199 = vpop.f32.mrf.mxu0
      %v1200 = vadd.f32 %v1151, %v1199
      %v1201 = vpop.f32.mrf.mxu0
      %v1202 = vadd.f32 %v1153, %v1201
      %1203 = vmatmul.bf16.gmra.mxu0 %v382
      %v1204 = vpop.f32.mrf.mxu0
      %v1205 = vadd.f32 %v1156, %v1204
      %v1206 = vpop.f32.mrf.mxu0
      %v1207 = vadd.f32 %v1158, %v1206
      %1208 = vmatmul.bf16.gmra.mxu0 %v389
      %v1209 = vpop.f32.mrf.mxu0
      %v1210 = vadd.f32 %v1161, %v1209
      %v1211 = vpop.f32.mrf.mxu0
      %v1212 = vadd.f32 %v1163, %v1211
      %1213 = vmatmul.bf16.gmra.mxu0 %v396
      %v1214 = vpop.f32.mrf.mxu0
      %v1215 = vadd.f32 %v1166, %v1214
      %v1216 = vpop.f32.mrf.mxu0
      %v1217 = vadd.f32 %v1168, %v1216
      %1218 = vdwg.mxu0
      %1219 = vmatpush.bf16.msra.mxu0 %v872
      %1220 = vmatpush.bf16.msra.mxu0 %v870
      %1221 = vmatpush.bf16.msra.mxu0 %v868
      %1222 = vmatpush.bf16.msra.mxu0 %v866
      %1223 = vmatpush.bf16.msra.mxu0 %v864
      %1224 = vmatpush.bf16.msra.mxu0 %v862
      %1225 = vmatpush.bf16.msra.mxu0 %v860
      %1226 = vmatpush.bf16.msra.mxu0 %v858
      %1227 = vmatmul.bf16.gmra.mxu0 %v348
      %v1228 = vpop.f32.mrf.mxu0
      %v1229 = vadd.f32 %v1180, %v1228
      %v1230 = vpop.f32.mrf.mxu0
      %v1231 = vadd.f32 %v1182, %v1230
      %1232 = vmatmul.bf16.gmra.mxu0 %v355
      %v1233 = vpop.f32.mrf.mxu0
      %v1234 = vadd.f32 %v1185, %v1233
      %v1235 = vpop.f32.mrf.mxu0
      %v1236 = vadd.f32 %v1187, %v1235
      %1237 = vmatmul.bf16.gmra.mxu0 %v362
      %v1238 = vpop.f32.mrf.mxu0
      %v1239 = vadd.f32 %v1190, %v1238
      %v1240 = vpop.f32.mrf.mxu0
      %v1241 = vadd.f32 %v1192, %v1240
      %1242 = vmatmul.bf16.gmra.mxu0 %v369
      %v1243 = vpop.f32.mrf.mxu0
      %v1244 = vadd.f32 %v1195, %v1243
      %v1245 = vpop.f32.mrf.mxu0
      %v1246 = vadd.f32 %v1197, %v1245
      %1247 = vmatmul.bf16.gmra.mxu0 %v376
      %v1248 = vpop.f32.mrf.mxu0
      %v1249 = vadd.f32 %v1200, %v1248
      %v1250 = vpop.f32.mrf.mxu0
      %v1251 = vadd.f32 %v1202, %v1250
      %1252 = vmatmul.bf16.gmra.mxu0 %v383
      %v1253 = vpop.f32.mrf.mxu0
      %v1254 = vadd.f32 %v1205, %v1253
      %v1255 = vpop.f32.mrf.mxu0
      %v1256 = vadd.f32 %v1207, %v1255
      %1257 = vmatmul.bf16.gmra.mxu0 %v390
      %v1258 = vpop.f32.mrf.mxu0
      %v1259 = vadd.f32 %v1210, %v1258
      %v1260 = vpop.f32.mrf.mxu0
      %v1261 = vadd.f32 %v1212, %v1260
      %1262 = vmatmul.bf16.gmra.mxu0 %v397
      %v1263 = vpop.f32.mrf.mxu0
      %v1264 = vadd.f32 %v1215, %v1263
      %v1265 = vpop.f32.mrf.mxu0
      %v1266 = vadd.f32 %v1217, %v1265
      %1267 = vdwg.mxu0
      %1268 = vmatpush.bf16.msra.mxu0 %v888
      %1269 = vmatpush.bf16.msra.mxu0 %v886
      %1270 = vmatpush.bf16.msra.mxu0 %v884
      %1271 = vmatpush.bf16.msra.mxu0 %v882
      %1272 = vmatpush.bf16.msra.mxu0 %v880
      %1273 = vmatpush.bf16.msra.mxu0 %v878
      %1274 = vmatpush.bf16.msra.mxu0 %v876
      %1275 = vmatpush.bf16.msra.mxu0 %v874
      %1276 = vmatmul.bf16.gmra.mxu0 %v349
      %v1277 = vpop.f32.mrf.mxu0
      %v1278 = vadd.f32 %v1229, %v1277
      %v1279 = vpop.f32.mrf.mxu0
      %v1280 = vadd.f32 %v1231, %v1279
      %1281 = vmatmul.bf16.gmra.mxu0 %v356
      %v1282 = vpop.f32.mrf.mxu0
      %v1283 = vadd.f32 %v1234, %v1282
      %v1284 = vpop.f32.mrf.mxu0
      %v1285 = vadd.f32 %v1236, %v1284
      %1286 = vmatmul.bf16.gmra.mxu0 %v363
      %v1287 = vpop.f32.mrf.mxu0
      %v1288 = vadd.f32 %v1239, %v1287
      %v1289 = vpop.f32.mrf.mxu0
      %v1290 = vadd.f32 %v1241, %v1289
      %1291 = vmatmul.bf16.gmra.mxu0 %v370
      %v1292 = vpop.f32.mrf.mxu0
      %v1293 = vadd.f32 %v1244, %v1292
      %v1294 = vpop.f32.mrf.mxu0
      %v1295 = vadd.f32 %v1246, %v1294
      %1296 = vmatmul.bf16.gmra.mxu0 %v377
      %v1297 = vpop.f32.mrf.mxu0
      %v1298 = vadd.f32 %v1249, %v1297
      %v1299 = vpop.f32.mrf.mxu0
      %v1300 = vadd.f32 %v1251, %v1299
      %1301 = vmatmul.bf16.gmra.mxu0 %v384
      %v1302 = vpop.f32.mrf.mxu0
      %v1303 = vadd.f32 %v1254, %v1302
      %v1304 = vpop.f32.mrf.mxu0
      %v1305 = vadd.f32 %v1256, %v1304
      %1306 = vmatmul.bf16.gmra.mxu0 %v391
      %v1307 = vpop.f32.mrf.mxu0
      %v1308 = vadd.f32 %v1259, %v1307
      %v1309 = vpop.f32.mrf.mxu0
      %v1310 = vadd.f32 %v1261, %v1309
      %1311 = vmatmul.bf16.gmra.mxu0 %v398
      %v1312 = vpop.f32.mrf.mxu0
      %v1313 = vadd.f32 %v1264, %v1312
      %v1314 = vpop.f32.mrf.mxu0
      %v1315 = vadd.f32 %v1266, %v1314
      %1316 = vdwg.mxu0
      %1317 = vmatpush.bf16.msra.mxu0 0
      %1318 = vmatpush.bf16.msra.mxu0 0
      %1319 = vmatpush.bf16.msra.mxu0 0
      %1320 = vmatpush.bf16.msra.mxu0 0
      %1321 = vmatpush.bf16.msra.mxu0 0
      %1322 = vmatpush.bf16.msra.mxu0 0
      %1323 = vmatpush.bf16.msra.mxu0 0
      %1324 = vmatpush.bf16.msra.mxu0 %v1018
      %1325 = vmatmul.bf16.gmra.mxu0 %v990
      %v1326 = vpop.f32.mrf.mxu0
      %v1327 = vadd.f32 %v1278, %v1326
      %v1328 = vpop.f32.mrf.mxu0
      %v1329 = vadd.f32 %v1280, %v1328
      %1330 = vmatmul.bf16.gmra.mxu0 %v993
      %v1331 = vpop.f32.mrf.mxu0
      %v1332 = vadd.f32 %v1283, %v1331
      %v1333 = vpop.f32.mrf.mxu0
      %v1334 = vadd.f32 %v1285, %v1333
      %1335 = vmatmul.bf16.gmra.mxu0 %v996
      %v1336 = vpop.f32.mrf.mxu0
      %v1337 = vadd.f32 %v1288, %v1336
      %v1338 = vpop.f32.mrf.mxu0
      %v1339 = vadd.f32 %v1290, %v1338
      %1340 = vmatmul.bf16.gmra.mxu0 %v999
      %v1341 = vpop.f32.mrf.mxu0
      %v1342 = vadd.f32 %v1293, %v1341
      %v1343 = vpop.f32.mrf.mxu0
      %v1344 = vadd.f32 %v1295, %v1343
      %1345 = vmatmul.bf16.gmra.mxu0 %v1002
      %v1346 = vpop.f32.mrf.mxu0
      %v1347 = vadd.f32 %v1298, %v1346
      %v1348 = vpop.f32.mrf.mxu0
      %v1349 = vadd.f32 %v1300, %v1348
      %1350 = vmatmul.bf16.gmra.mxu0 %v1005
      %v1351 = vpop.f32.mrf.mxu0
      %v1352 = vadd.f32 %v1303, %v1351
      %v1353 = vpop.f32.mrf.mxu0
      %v1354 = vadd.f32 %v1305, %v1353
      %1355 = vmatmul.bf16.gmra.mxu0 %v1008
      %v1356 = vpop.f32.mrf.mxu0
      %v1357 = vadd.f32 %v1308, %v1356
      %v1358 = vpop.f32.mrf.mxu0
      %v1359 = vadd.f32 %v1310, %v1358
      %1360 = vmatmul.bf16.gmra.mxu0 %v1011
      %v1361 = vpop.f32.mrf.mxu0
      %v1362 = vadd.f32 %v1313, %v1361
      %v1363 = vpop.f32.mrf.mxu0
      %v1364 = vadd.f32 %v1315, %v1363
      %1365 = vdwg.mxu0
      %1366 = vmatpush.bf16.msra.mxu0 %v809
      %1367 = vmatpush.bf16.msra.mxu0 %v807
      %1368 = vmatpush.bf16.msra.mxu0 %v805
      %1369 = vmatpush.bf16.msra.mxu0 %v803
      %1370 = vmatpush.bf16.msra.mxu0 %v801
      %1371 = vmatpush.bf16.msra.mxu0 %v799
      %1372 = vmatpush.bf16.msra.mxu0 %v797
      %1373 = vmatpush.bf16.msra.mxu0 %v795
      %1374 = vmatmul.bf16.gmra.mxu0 %v344
      %v1375 = vpop.f32.mrf.mxu0
      %v1376 = vadd.f32 %v500, %v1375
      %v1377 = vpop.f32.mrf.mxu0
      %v1378 = vadd.f32 %v500, %v1377
      %1379 = vmatmul.bf16.gmra.mxu0 %v351
      %v1380 = vpop.f32.mrf.mxu0
      %v1381 = vadd.f32 %v500, %v1380
      %v1382 = vpop.f32.mrf.mxu0
      %v1383 = vadd.f32 %v500, %v1382
      %1384 = vmatmul.bf16.gmra.mxu0 %v358
      %v1385 = vpop.f32.mrf.mxu0
      %v1386 = vadd.f32 %v500, %v1385
      %v1387 = vpop.f32.mrf.mxu0
      %v1388 = vadd.f32 %v500, %v1387
      %1389 = vmatmul.bf16.gmra.mxu0 %v365
      %v1390 = vpop.f32.mrf.mxu0
      %v1391 = vadd.f32 %v500, %v1390
      %v1392 = vpop.f32.mrf.mxu0
      %v1393 = vadd.f32 %v500, %v1392
      %1394 = vmatmul.bf16.gmra.mxu0 %v372
      %v1395 = vpop.f32.mrf.mxu0
      %v1396 = vadd.f32 %v500, %v1395
      %v1397 = vpop.f32.mrf.mxu0
      %v1398 = vadd.f32 %v500, %v1397
      %1399 = vmatmul.bf16.gmra.mxu0 %v379
      %v1400 = vpop.f32.mrf.mxu0
      %v1401 = vadd.f32 %v500, %v1400
      %v1402 = vpop.f32.mrf.mxu0
      %v1403 = vadd.f32 %v500, %v1402
      %1404 = vmatmul.bf16.gmra.mxu0 %v386
      %v1405 = vpop.f32.mrf.mxu0
      %v1406 = vadd.f32 %v500, %v1405
      %v1407 = vpop.f32.mrf.mxu0
      %v1408 = vadd.f32 %v500, %v1407
      %1409 = vmatmul.bf16.gmra.mxu0 %v393
      %v1410 = vpop.f32.mrf.mxu0
      %v1411 = vadd.f32 %v500, %v1410
      %v1412 = vpop.f32.mrf.mxu0
      %v1413 = vadd.f32 %v500, %v1412
      %1414 = vdwg.mxu0
      %1415 = vmatpush.bf16.msra.mxu0 %v825
      %1416 = vmatpush.bf16.msra.mxu0 %v823
      %1417 = vmatpush.bf16.msra.mxu0 %v821
      %1418 = vmatpush.bf16.msra.mxu0 %v819
      %1419 = vmatpush.bf16.msra.mxu0 %v817
      %1420 = vmatpush.bf16.msra.mxu0 %v815
      %1421 = vmatpush.bf16.msra.mxu0 %v813
      %1422 = vmatpush.bf16.msra.mxu0 %v811
      %1423 = vmatmul.bf16.gmra.mxu0 %v345
      %v1424 = vpop.f32.mrf.mxu0
      %v1425 = vadd.f32 %v1376, %v1424
      %v1426 = vpop.f32.mrf.mxu0
      %v1427 = vadd.f32 %v1378, %v1426
      %1428 = vmatmul.bf16.gmra.mxu0 %v352
      %v1429 = vpop.f32.mrf.mxu0
      %v1430 = vadd.f32 %v1381, %v1429
      %v1431 = vpop.f32.mrf.mxu0
      %v1432 = vadd.f32 %v1383, %v1431
      %1433 = vmatmul.bf16.gmra.mxu0 %v359
      %v1434 = vpop.f32.mrf.mxu0
      %v1435 = vadd.f32 %v1386, %v1434
      %v1436 = vpop.f32.mrf.mxu0
      %v1437 = vadd.f32 %v1388, %v1436
      %1438 = vmatmul.bf16.gmra.mxu0 %v366
      %v1439 = vpop.f32.mrf.mxu0
      %v1440 = vadd.f32 %v1391, %v1439
      %v1441 = vpop.f32.mrf.mxu0
      %v1442 = vadd.f32 %v1393, %v1441
      %1443 = vmatmul.bf16.gmra.mxu0 %v373
      %v1444 = vpop.f32.mrf.mxu0
      %v1445 = vadd.f32 %v1396, %v1444
      %v1446 = vpop.f32.mrf.mxu0
      %v1447 = vadd.f32 %v1398, %v1446
      %1448 = vmatmul.bf16.gmra.mxu0 %v380
      %v1449 = vpop.f32.mrf.mxu0
      %v1450 = vadd.f32 %v1401, %v1449
      %v1451 = vpop.f32.mrf.mxu0
      %v1452 = vadd.f32 %v1403, %v1451
      %1453 = vmatmul.bf16.gmra.mxu0 %v387
      %v1454 = vpop.f32.mrf.mxu0
      %v1455 = vadd.f32 %v1406, %v1454
      %v1456 = vpop.f32.mrf.mxu0
      %v1457 = vadd.f32 %v1408, %v1456
      %1458 = vmatmul.bf16.gmra.mxu0 %v394
      %v1459 = vpop.f32.mrf.mxu0
      %v1460 = vadd.f32 %v1411, %v1459
      %v1461 = vpop.f32.mrf.mxu0
      %v1462 = vadd.f32 %v1413, %v1461
      %1463 = vdwg.mxu0
      %1464 = vmatpush.bf16.msra.mxu0 %v841
      %1465 = vmatpush.bf16.msra.mxu0 %v839
      %1466 = vmatpush.bf16.msra.mxu0 %v837
      %1467 = vmatpush.bf16.msra.mxu0 %v835
      %1468 = vmatpush.bf16.msra.mxu0 %v833
      %1469 = vmatpush.bf16.msra.mxu0 %v831
      %1470 = vmatpush.bf16.msra.mxu0 %v829
      %1471 = vmatpush.bf16.msra.mxu0 %v827
      %1472 = vmatmul.bf16.gmra.mxu0 %v346
      %v1473 = vpop.f32.mrf.mxu0
      %v1474 = vadd.f32 %v1425, %v1473
      %v1475 = vpop.f32.mrf.mxu0
      %v1476 = vadd.f32 %v1427, %v1475
      %1477 = vmatmul.bf16.gmra.mxu0 %v353
      %v1478 = vpop.f32.mrf.mxu0
      %v1479 = vadd.f32 %v1430, %v1478
      %v1480 = vpop.f32.mrf.mxu0
      %v1481 = vadd.f32 %v1432, %v1480
      %1482 = vmatmul.bf16.gmra.mxu0 %v360
      %v1483 = vpop.f32.mrf.mxu0
      %v1484 = vadd.f32 %v1435, %v1483
      %v1485 = vpop.f32.mrf.mxu0
      %v1486 = vadd.f32 %v1437, %v1485
      %1487 = vmatmul.bf16.gmra.mxu0 %v367
      %v1488 = vpop.f32.mrf.mxu0
      %v1489 = vadd.f32 %v1440, %v1488
      %v1490 = vpop.f32.mrf.mxu0
      %v1491 = vadd.f32 %v1442, %v1490
      %1492 = vmatmul.bf16.gmra.mxu0 %v374
      %v1493 = vpop.f32.mrf.mxu0
      %v1494 = vadd.f32 %v1445, %v1493
      %v1495 = vpop.f32.mrf.mxu0
      %v1496 = vadd.f32 %v1447, %v1495
      %1497 = vmatmul.bf16.gmra.mxu0 %v381
      %v1498 = vpop.f32.mrf.mxu0
      %v1499 = vadd.f32 %v1450, %v1498
      %v1500 = vpop.f32.mrf.mxu0
      %v1501 = vadd.f32 %v1452, %v1500
      %1502 = vmatmul.bf16.gmra.mxu0 %v388
      %v1503 = vpop.f32.mrf.mxu0
      %v1504 = vadd.f32 %v1455, %v1503
      %v1505 = vpop.f32.mrf.mxu0
      %v1506 = vadd.f32 %v1457, %v1505
      %1507 = vmatmul.bf16.gmra.mxu0 %v395
      %v1508 = vpop.f32.mrf.mxu0
      %v1509 = vadd.f32 %v1460, %v1508
      %v1510 = vpop.f32.mrf.mxu0
      %v1511 = vadd.f32 %v1462, %v1510
      %1512 = vdwg.mxu0
      %1513 = vmatpush.bf16.msra.mxu0 %v857
      %1514 = vmatpush.bf16.msra.mxu0 %v855
      %1515 = vmatpush.bf16.msra.mxu0 %v853
      %1516 = vmatpush.bf16.msra.mxu0 %v851
      %1517 = vmatpush.bf16.msra.mxu0 %v849
      %1518 = vmatpush.bf16.msra.mxu0 %v847
      %1519 = vmatpush.bf16.msra.mxu0 %v845
      %1520 = vmatpush.bf16.msra.mxu0 %v843
      %1521 = vmatmul.bf16.gmra.mxu0 %v347
      %v1522 = vpop.f32.mrf.mxu0
      %v1523 = vadd.f32 %v1474, %v1522
      %v1524 = vpop.f32.mrf.mxu0
      %v1525 = vadd.f32 %v1476, %v1524
      %1526 = vmatmul.bf16.gmra.mxu0 %v354
      %v1527 = vpop.f32.mrf.mxu0
      %v1528 = vadd.f32 %v1479, %v1527
      %v1529 = vpop.f32.mrf.mxu0
      %v1530 = vadd.f32 %v1481, %v1529
      %1531 = vmatmul.bf16.gmra.mxu0 %v361
      %v1532 = vpop.f32.mrf.mxu0
      %v1533 = vadd.f32 %v1484, %v1532
      %v1534 = vpop.f32.mrf.mxu0
      %v1535 = vadd.f32 %v1486, %v1534
      %1536 = vmatmul.bf16.gmra.mxu0 %v368
      %v1537 = vpop.f32.mrf.mxu0
      %v1538 = vadd.f32 %v1489, %v1537
      %v1539 = vpop.f32.mrf.mxu0
      %v1540 = vadd.f32 %v1491, %v1539
      %1541 = vmatmul.bf16.gmra.mxu0 %v375
      %v1542 = vpop.f32.mrf.mxu0
      %v1543 = vadd.f32 %v1494, %v1542
      %v1544 = vpop.f32.mrf.mxu0
      %v1545 = vadd.f32 %v1496, %v1544
      %1546 = vmatmul.bf16.gmra.mxu0 %v382
      %v1547 = vpop.f32.mrf.mxu0
      %v1548 = vadd.f32 %v1499, %v1547
      %v1549 = vpop.f32.mrf.mxu0
      %v1550 = vadd.f32 %v1501, %v1549
      %1551 = vmatmul.bf16.gmra.mxu0 %v389
      %v1552 = vpop.f32.mrf.mxu0
      %v1553 = vadd.f32 %v1504, %v1552
      %v1554 = vpop.f32.mrf.mxu0
      %v1555 = vadd.f32 %v1506, %v1554
      %1556 = vmatmul.bf16.gmra.mxu0 %v396
      %v1557 = vpop.f32.mrf.mxu0
      %v1558 = vadd.f32 %v1509, %v1557
      %v1559 = vpop.f32.mrf.mxu0
      %v1560 = vadd.f32 %v1511, %v1559
      %1561 = vdwg.mxu0
      %1562 = vmatpush.bf16.msra.mxu0 %v873
      %1563 = vmatpush.bf16.msra.mxu0 %v871
      %1564 = vmatpush.bf16.msra.mxu0 %v869
      %1565 = vmatpush.bf16.msra.mxu0 %v867
      %1566 = vmatpush.bf16.msra.mxu0 %v865
      %1567 = vmatpush.bf16.msra.mxu0 %v863
      %1568 = vmatpush.bf16.msra.mxu0 %v861
      %1569 = vmatpush.bf16.msra.mxu0 %v859
      %1570 = vmatmul.bf16.gmra.mxu0 %v348
      %v1571 = vpop.f32.mrf.mxu0
      %v1572 = vadd.f32 %v1523, %v1571
      %v1573 = vpop.f32.mrf.mxu0
      %v1574 = vadd.f32 %v1525, %v1573
      %1575 = vmatmul.bf16.gmra.mxu0 %v355
      %v1576 = vpop.f32.mrf.mxu0
      %v1577 = vadd.f32 %v1528, %v1576
      %v1578 = vpop.f32.mrf.mxu0
      %v1579 = vadd.f32 %v1530, %v1578
      %1580 = vmatmul.bf16.gmra.mxu0 %v362
      %v1581 = vpop.f32.mrf.mxu0
      %v1582 = vadd.f32 %v1533, %v1581
      %v1583 = vpop.f32.mrf.mxu0
      %v1584 = vadd.f32 %v1535, %v1583
      %1585 = vmatmul.bf16.gmra.mxu0 %v369
      %v1586 = vpop.f32.mrf.mxu0
      %v1587 = vadd.f32 %v1538, %v1586
      %v1588 = vpop.f32.mrf.mxu0
      %v1589 = vadd.f32 %v1540, %v1588
      %1590 = vmatmul.bf16.gmra.mxu0 %v376
      %v1591 = vpop.f32.mrf.mxu0
      %v1592 = vadd.f32 %v1543, %v1591
      %v1593 = vpop.f32.mrf.mxu0
      %v1594 = vadd.f32 %v1545, %v1593
      %1595 = vmatmul.bf16.gmra.mxu0 %v383
      %v1596 = vpop.f32.mrf.mxu0
      %v1597 = vadd.f32 %v1548, %v1596
      %v1598 = vpop.f32.mrf.mxu0
      %v1599 = vadd.f32 %v1550, %v1598
      %1600 = vmatmul.bf16.gmra.mxu0 %v390
      %v1601 = vpop.f32.mrf.mxu0
      %v1602 = vadd.f32 %v1553, %v1601
      %v1603 = vpop.f32.mrf.mxu0
      %v1604 = vadd.f32 %v1555, %v1603
      %1605 = vmatmul.bf16.gmra.mxu0 %v397
      %v1606 = vpop.f32.mrf.mxu0
      %v1607 = vadd.f32 %v1558, %v1606
      %v1608 = vpop.f32.mrf.mxu0
      %v1609 = vadd.f32 %v1560, %v1608
      %1610 = vdwg.mxu0
      %1611 = vmatpush.bf16.msra.mxu0 %v889
      %1612 = vmatpush.bf16.msra.mxu0 %v887
      %1613 = vmatpush.bf16.msra.mxu0 %v885
      %1614 = vmatpush.bf16.msra.mxu0 %v883
      %1615 = vmatpush.bf16.msra.mxu0 %v881
      %1616 = vmatpush.bf16.msra.mxu0 %v879
      %1617 = vmatpush.bf16.msra.mxu0 %v877
      %1618 = vmatpush.bf16.msra.mxu0 %v875
      %1619 = vmatmul.bf16.gmra.mxu0 %v349
      %v1620 = vpop.f32.mrf.mxu0
      %v1621 = vadd.f32 %v1572, %v1620
      %v1622 = vpop.f32.mrf.mxu0
      %v1623 = vadd.f32 %v1574, %v1622
      %1624 = vmatmul.bf16.gmra.mxu0 %v356
      %v1625 = vpop.f32.mrf.mxu0
      %v1626 = vadd.f32 %v1577, %v1625
      %v1627 = vpop.f32.mrf.mxu0
      %v1628 = vadd.f32 %v1579, %v1627
      %1629 = vmatmul.bf16.gmra.mxu0 %v363
      %v1630 = vpop.f32.mrf.mxu0
      %v1631 = vadd.f32 %v1582, %v1630
      %v1632 = vpop.f32.mrf.mxu0
      %v1633 = vadd.f32 %v1584, %v1632
      %1634 = vmatmul.bf16.gmra.mxu0 %v370
      %v1635 = vpop.f32.mrf.mxu0
      %v1636 = vadd.f32 %v1587, %v1635
      %v1637 = vpop.f32.mrf.mxu0
      %v1638 = vadd.f32 %v1589, %v1637
      %1639 = vmatmul.bf16.gmra.mxu0 %v377
      %v1640 = vpop.f32.mrf.mxu0
      %v1641 = vadd.f32 %v1592, %v1640
      %v1642 = vpop.f32.mrf.mxu0
      %v1643 = vadd.f32 %v1594, %v1642
      %1644 = vmatmul.bf16.gmra.mxu0 %v384
      %v1645 = vpop.f32.mrf.mxu0
      %v1646 = vadd.f32 %v1597, %v1645
      %v1647 = vpop.f32.mrf.mxu0
      %v1648 = vadd.f32 %v1599, %v1647
      %1649 = vmatmul.bf16.gmra.mxu0 %v391
      %v1650 = vpop.f32.mrf.mxu0
      %v1651 = vadd.f32 %v1602, %v1650
      %v1652 = vpop.f32.mrf.mxu0
      %v1653 = vadd.f32 %v1604, %v1652
      %1654 = vmatmul.bf16.gmra.mxu0 %v398
      %v1655 = vpop.f32.mrf.mxu0
      %v1656 = vadd.f32 %v1607, %v1655
      %v1657 = vpop.f32.mrf.mxu0
      %v1658 = vadd.f32 %v1609, %v1657
      %1659 = vdwg.mxu0
      %1660 = vmatpush.bf16.msra.mxu0 0
      %1661 = vmatpush.bf16.msra.mxu0 0
      %1662 = vmatpush.bf16.msra.mxu0 0
      %1663 = vmatpush.bf16.msra.mxu0 0
      %1664 = vmatpush.bf16.msra.mxu0 0
      %1665 = vmatpush.bf16.msra.mxu0 0
      %1666 = vmatpush.bf16.msra.mxu0 0
      %1667 = vmatpush.bf16.msra.mxu0 %v1021
      %1668 = vmatmul.bf16.gmra.mxu0 %v990
      %v1669 = vpop.f32.mrf.mxu0
      %v1670 = vadd.f32 %v1621, %v1669
      %v1671 = vpop.f32.mrf.mxu0
      %v1672 = vadd.f32 %v1623, %v1671
      %1673 = vmatmul.bf16.gmra.mxu0 %v993
      %v1674 = vpop.f32.mrf.mxu0
      %v1675 = vadd.f32 %v1626, %v1674
      %v1676 = vpop.f32.mrf.mxu0
      %v1677 = vadd.f32 %v1628, %v1676
      %1678 = vmatmul.bf16.gmra.mxu0 %v996
      %v1679 = vpop.f32.mrf.mxu0
      %v1680 = vadd.f32 %v1631, %v1679
      %v1681 = vpop.f32.mrf.mxu0
      %v1682 = vadd.f32 %v1633, %v1681
      %1683 = vmatmul.bf16.gmra.mxu0 %v999
      %v1684 = vpop.f32.mrf.mxu0
      %v1685 = vadd.f32 %v1636, %v1684
      %v1686 = vpop.f32.mrf.mxu0
      %v1687 = vadd.f32 %v1638, %v1686
      %1688 = vmatmul.bf16.gmra.mxu0 %v1002
      %v1689 = vpop.f32.mrf.mxu0
      %v1690 = vadd.f32 %v1641, %v1689
      %v1691 = vpop.f32.mrf.mxu0
      %v1692 = vadd.f32 %v1643, %v1691
      %1693 = vmatmul.bf16.gmra.mxu0 %v1005
      %v1694 = vpop.f32.mrf.mxu0
      %v1695 = vadd.f32 %v1646, %v1694
      %v1696 = vpop.f32.mrf.mxu0
      %v1697 = vadd.f32 %v1648, %v1696
      %1698 = vmatmul.bf16.gmra.mxu0 %v1008
      %v1699 = vpop.f32.mrf.mxu0
      %v1700 = vadd.f32 %v1651, %v1699
      %v1701 = vpop.f32.mrf.mxu0
      %v1702 = vadd.f32 %v1653, %v1701
      %1703 = vmatmul.bf16.gmra.mxu0 %v1011
      %v1704 = vpop.f32.mrf.mxu0
      %v1705 = vadd.f32 %v1656, %v1704
      %v1706 = vpop.f32.mrf.mxu0
      %v1707 = vadd.f32 %v1658, %v1706
      %1708 = vdwg.mxu0
      %v1709 = vmax.f32 %v1327, 0.0
      %v1710 = vmax.f32 %v1670, 0.0
      %v1711 = vmax.f32 %v1329, 0.0
      %v1712 = vmax.f32 %v1672, 0.0
      %v1713 = vmax.f32 %v1332, 0.0
      %v1714 = vmax.f32 %v1675, 0.0
      %v1715 = vmax.f32 %v1334, 0.0
      %v1716 = vmax.f32 %v1677, 0.0
      %v1717 = vmax.f32 %v1337, 0.0
      %v1718 = vmax.f32 %v1680, 0.0
      %v1719 = vmax.f32 %v1339, 0.0
      %v1720 = vmax.f32 %v1682, 0.0
      %v1721 = vmax.f32 %v1342, 0.0
      %v1722 = vmax.f32 %v1685, 0.0
      %v1723 = vmax.f32 %v1344, 0.0
      %v1724 = vmax.f32 %v1687, 0.0
      %v1725 = vmax.f32 %v1347, 0.0
      %v1726 = vmax.f32 %v1690, 0.0
      %v1727 = vmax.f32 %v1349, 0.0
      %v1728 = vmax.f32 %v1692, 0.0
      %v1729 = vmax.f32 %v1352, 0.0
      %v1730 = vmax.f32 %v1695, 0.0
      %v1731 = vmax.f32 %v1354, 0.0
      %v1732 = vmax.f32 %v1697, 0.0
      %v1733 = vmax.f32 %v1357, 0.0
      %v1734 = vmax.f32 %v1700, 0.0
      %v1735 = vmax.f32 %v1359, 0.0
      %v1736 = vmax.f32 %v1702, 0.0
      %v1737 = vmax.f32 %v1362, 0.0
      %v1738 = vmax.f32 %v1705, 0.0
      %v1739 = vmax.f32 %v1364, 0.0
      %v1740 = vmax.f32 %v1707, 0.0
      %v1741 = vpack.c.bf16 %v1711, %v1709
      %v1742 = vpack.c.bf16 %v1712, %v1710
      %v1743 = vpack.c.bf16 %v1715, %v1713
      %v1744 = vpack.c.bf16 %v1716, %v1714
      %v1745 = vpack.c.bf16 %v1719, %v1717
      %v1746 = vpack.c.bf16 %v1720, %v1718
      %v1747 = vpack.c.bf16 %v1723, %v1721
      %v1748 = vpack.c.bf16 %v1724, %v1722
      %v1749 = vpack.c.bf16 %v1727, %v1725
      %v1750 = vpack.c.bf16 %v1728, %v1726
      %v1751 = vpack.c.bf16 %v1731, %v1729
      %v1752 = vpack.c.bf16 %v1732, %v1730
      %v1753 = vpack.c.bf16 %v1735, %v1733
      %v1754 = vpack.c.bf16 %v1736, %v1734
      %v1755 = vpack.c.bf16 %v1739, %v1737
      %v1756 = vpack.c.bf16 %v1740, %v1738
      %v1757 = vld [vmem:[%s3] sm:$0xf]
      %v1758 = vld [vmem:[%s3 + $0x4] sm:$0xf]
      %v1759 = vld [vmem:[%s3 + $0x8] sm:$0xf]
      %v1760 = vld [vmem:[%s3 + $0xc] sm:$0xf]
      %v1761 = vld [vmem:[%s3 + $0x10] sm:$0xf]
      %v1762 = vld [vmem:[%s3 + $0x14] sm:$0xf]
      %v1763 = vld [vmem:[%s3 + $0x18] sm:$0xf]
      %v1764 = vld [vmem:[%s3 + $0x1c] sm:$0xf]
      %v1765 = vld [vmem:[%s3 + $0x20] sm:$0xf]
      %v1766 = vld [vmem:[%s3 + $0x24] sm:$0xf]
      %v1767 = vld [vmem:[%s3 + $0x28] sm:$0xf]
      %v1768 = vld [vmem:[%s3 + $0x2c] sm:$0xf]
      %v1769 = vld [vmem:[%s3 + $0x30] sm:$0xf]
      %v1770 = vld [vmem:[%s3 + $0x34] sm:$0xf]
      %v1771 = vld [vmem:[%s3 + $0x38] sm:$0xf]
      %v1772 = vld [vmem:[%s3 + $0x3c] sm:$0xf]
      %v1773 = vld [vmem:[%s3 + $0x40] sm:$0xf]
      %v1774 = vld [vmem:[%s3 + $0x44] sm:$0xf]
      %v1775 = vld [vmem:[%s3 + $0x48] sm:$0xf]
      %v1776 = vld [vmem:[%s3 + $0x4c] sm:$0xf]
      %v1777 = vld [vmem:[%s3 + $0x50] sm:$0xf]
      %v1778 = vld [vmem:[%s3 + $0x54] sm:$0xf]
      %v1779 = vld [vmem:[%s3 + $0x58] sm:$0xf]
      %v1780 = vld [vmem:[%s3 + $0x5c] sm:$0xf]
      %v1781 = vld [vmem:[%s3 + $0x60] sm:$0xf]
      %v1782 = vld [vmem:[%s3 + $0x64] sm:$0xf]
      %v1783 = vld [vmem:[%s3 + $0x68] sm:$0xf]
      %v1784 = vld [vmem:[%s3 + $0x6c] sm:$0xf]
      %v1785 = vld [vmem:[%s3 + $0x70] sm:$0xf]
      %v1786 = vld [vmem:[%s3 + $0x74] sm:$0xf]
      %v1787 = vld [vmem:[%s3 + $0x78] sm:$0xf]
      %v1788 = vld [vmem:[%s3 + $0x7c] sm:$0xf]
      %v1789 = vld [vmem:[%s4] sm:$0x1]
      %v1791 = vperm.slane %v1789, 0
      %v1825 = vunpack.c.l.b16 %v1757
      %v1826 = vunpack.c.l.b16 %v1758
      %v1827 = vunpack.c.l.b16 %v1759
      %v1828 = vunpack.c.l.b16 %v1760
      %v1829 = vunpack.c.l.b16 %v1761
      %v1830 = vunpack.c.l.b16 %v1762
      %v1831 = vunpack.c.l.b16 %v1763
      %v1832 = vunpack.c.l.b16 %v1764
      %v1833 = vunpack.c.l.b16 %v1765
      %v1834 = vunpack.c.l.b16 %v1766
      %v1835 = vunpack.c.l.b16 %v1767
      %v1836 = vunpack.c.l.b16 %v1768
      %v1837 = vunpack.c.l.b16 %v1769
      %v1838 = vunpack.c.l.b16 %v1770
      %v1839 = vunpack.c.l.b16 %v1771
      %v1840 = vunpack.c.l.b16 %v1772
      %v1841 = vunpack.c.l.b16 %v1773
      %v1842 = vunpack.c.l.b16 %v1774
      %v1843 = vunpack.c.l.b16 %v1775
      %v1844 = vunpack.c.l.b16 %v1776
      %v1845 = vunpack.c.l.b16 %v1777
      %v1846 = vunpack.c.l.b16 %v1778
      %v1847 = vunpack.c.l.b16 %v1779
      %v1848 = vunpack.c.l.b16 %v1780
      %v1849 = vunpack.c.l.b16 %v1781
      %v1850 = vunpack.c.l.b16 %v1782
      %v1851 = vunpack.c.l.b16 %v1783
      %v1852 = vunpack.c.l.b16 %v1784
      %v1853 = vunpack.c.l.b16 %v1785
      %v1854 = vunpack.c.l.b16 %v1786
      %v1855 = vunpack.c.l.b16 %v1787
      %v1856 = vunpack.c.l.b16 %v1788
      %v1857 = vpack.c.b16 %v1826, %v1825
      %v1858 = vpack.c.b16 %v1828, %v1827
      %v1859 = vpack.c.b16 %v1830, %v1829
      %v1860 = vpack.c.b16 %v1832, %v1831
      %v1861 = vpack.c.b16 %v1834, %v1833
      %v1862 = vpack.c.b16 %v1836, %v1835
      %v1863 = vpack.c.b16 %v1838, %v1837
      %v1864 = vpack.c.b16 %v1840, %v1839
      %v1865 = vpack.c.b16 %v1842, %v1841
      %v1866 = vpack.c.b16 %v1844, %v1843
      %v1867 = vpack.c.b16 %v1846, %v1845
      %v1868 = vpack.c.b16 %v1848, %v1847
      %v1869 = vpack.c.b16 %v1850, %v1849
      %v1870 = vpack.c.b16 %v1852, %v1851
      %v1871 = vpack.c.b16 %v1854, %v1853
      %v1872 = vpack.c.b16 %v1856, %v1855
      %1889 = vmatpush.bf16.msra.mxu0 %v1864
      %1890 = vmatpush.bf16.msra.mxu0 %v1863
      %1891 = vmatpush.bf16.msra.mxu0 %v1862
      %1892 = vmatpush.bf16.msra.mxu0 %v1861
      %1893 = vmatpush.bf16.msra.mxu0 %v1860
      %1894 = vmatpush.bf16.msra.mxu0 %v1859
      %1895 = vmatpush.bf16.msra.mxu0 %v1858
      %1896 = vmatpush.bf16.msra.mxu0 %v1857
      %1897 = vmatmul.bf16.gmra.mxu0 %v1741
      %v1898 = vpop.f32.mrf.mxu0
      %v1899 = vadd.f32 %v1791, %v1898
      %v1900 = vpop.f32.mrf.mxu0
      %v1901 = vadd.f32 %v1791, %v1900
      %1902 = vmatmul.bf16.gmra.mxu0 %v1743
      %v1903 = vpop.f32.mrf.mxu0
      %v1904 = vadd.f32 %v1791, %v1903
      %v1905 = vpop.f32.mrf.mxu0
      %v1906 = vadd.f32 %v1791, %v1905
      %1907 = vmatmul.bf16.gmra.mxu0 %v1745
      %v1908 = vpop.f32.mrf.mxu0
      %v1909 = vadd.f32 %v1791, %v1908
      %v1910 = vpop.f32.mrf.mxu0
      %v1911 = vadd.f32 %v1791, %v1910
      %1912 = vmatmul.bf16.gmra.mxu0 %v1747
      %v1913 = vpop.f32.mrf.mxu0
      %v1914 = vadd.f32 %v1791, %v1913
      %v1915 = vpop.f32.mrf.mxu0
      %v1916 = vadd.f32 %v1791, %v1915
      %1917 = vmatmul.bf16.gmra.mxu0 %v1749
      %v1918 = vpop.f32.mrf.mxu0
      %v1919 = vadd.f32 %v1791, %v1918
      %v1920 = vpop.f32.mrf.mxu0
      %v1921 = vadd.f32 %v1791, %v1920
      %1922 = vmatmul.bf16.gmra.mxu0 %v1751
      %v1923 = vpop.f32.mrf.mxu0
      %v1924 = vadd.f32 %v1791, %v1923
      %v1925 = vpop.f32.mrf.mxu0
      %v1926 = vadd.f32 %v1791, %v1925
      %1927 = vmatmul.bf16.gmra.mxu0 %v1753
      %v1928 = vpop.f32.mrf.mxu0
      %v1929 = vadd.f32 %v1791, %v1928
      %v1930 = vpop.f32.mrf.mxu0
      %v1931 = vadd.f32 %v1791, %v1930
      %1932 = vmatmul.bf16.gmra.mxu0 %v1755
      %v1933 = vpop.f32.mrf.mxu0
      %v1934 = vadd.f32 %v1791, %v1933
      %v1935 = vpop.f32.mrf.mxu0
      %v1936 = vadd.f32 %v1791, %v1935
      %1937 = vdwg.mxu0
      %1938 = vmatpush.bf16.msra.mxu0 %v1872
      %1939 = vmatpush.bf16.msra.mxu0 %v1871
      %1940 = vmatpush.bf16.msra.mxu0 %v1870
      %1941 = vmatpush.bf16.msra.mxu0 %v1869
      %1942 = vmatpush.bf16.msra.mxu0 %v1868
      %1943 = vmatpush.bf16.msra.mxu0 %v1867
      %1944 = vmatpush.bf16.msra.mxu0 %v1866
      %1945 = vmatpush.bf16.msra.mxu0 %v1865
      %1946 = vmatmul.bf16.gmra.mxu0 %v1742
      %v1947 = vpop.f32.mrf.mxu0
      %v1948 = vadd.f32 %v1899, %v1947
      %v1949 = vpop.f32.mrf.mxu0
      %v1950 = vadd.f32 %v1901, %v1949
      %1951 = vmatmul.bf16.gmra.mxu0 %v1744
      %v1952 = vpop.f32.mrf.mxu0
      %v1953 = vadd.f32 %v1904, %v1952
      %v1954 = vpop.f32.mrf.mxu0
      %v1955 = vadd.f32 %v1906, %v1954
      %1956 = vmatmul.bf16.gmra.mxu0 %v1746
      %v1957 = vpop.f32.mrf.mxu0
      %v1958 = vadd.f32 %v1909, %v1957
      %v1959 = vpop.f32.mrf.mxu0
      %v1960 = vadd.f32 %v1911, %v1959
      %1961 = vmatmul.bf16.gmra.mxu0 %v1748
      %v1962 = vpop.f32.mrf.mxu0
      %v1963 = vadd.f32 %v1914, %v1962
      %v1964 = vpop.f32.mrf.mxu0
      %v1965 = vadd.f32 %v1916, %v1964
      %1966 = vmatmul.bf16.gmra.mxu0 %v1750
      %v1967 = vpop.f32.mrf.mxu0
      %v1968 = vadd.f32 %v1919, %v1967
      %v1969 = vpop.f32.mrf.mxu0
      %v1970 = vadd.f32 %v1921, %v1969
      %1971 = vmatmul.bf16.gmra.mxu0 %v1752
      %v1972 = vpop.f32.mrf.mxu0
      %v1973 = vadd.f32 %v1924, %v1972
      %v1974 = vpop.f32.mrf.mxu0
      %v1975 = vadd.f32 %v1926, %v1974
      %1976 = vmatmul.bf16.gmra.mxu0 %v1754
      %v1977 = vpop.f32.mrf.mxu0
      %v1978 = vadd.f32 %v1929, %v1977
      %v1979 = vpop.f32.mrf.mxu0
      %v1980 = vadd.f32 %v1931, %v1979
      %1981 = vmatmul.bf16.gmra.mxu0 %v1756
      %v1982 = vpop.f32.mrf.mxu0
      %v1983 = vadd.f32 %v1934, %v1982
      %v1984 = vpop.f32.mrf.mxu0
      %v1985 = vadd.f32 %v1936, %v1984
      %1986 = vdwg.mxu0
      %1987 = vst [vmem:[%s229] sm:$0xff] %v1948
      %1988 = vst [vmem:[%s229 + $0x8] sm:$0xff] %v1950
      %1989 = vst [vmem:[%s229 + $0x10] sm:$0xff] %v1953
      %1990 = vst [vmem:[%s229 + $0x18] sm:$0xff] %v1955
      %1991 = vst [vmem:[%s229 + $0x20] sm:$0xff] %v1958
      %1992 = vst [vmem:[%s229 + $0x28] sm:$0xff] %v1960
      %1993 = vst [vmem:[%s229 + $0x30] sm:$0xff] %v1963
      %1994 = vst [vmem:[%s229 + $0x38] sm:$0xff] %v1965
      %1995 = vst [vmem:[%s229 + $0x40] sm:$0xff] %v1968
      %1996 = vst [vmem:[%s229 + $0x48] sm:$0xff] %v1970
      %1997 = vst [vmem:[%s229 + $0x50] sm:$0xff] %v1973
      %1998 = vst [vmem:[%s229 + $0x58] sm:$0xff] %v1975
      %1999 = vst [vmem:[%s229 + $0x60] sm:$0xff] %v1978
      %2000 = vst [vmem:[%s229 + $0x68] sm:$0xff] %v1980
      %2001 = vst [vmem:[%s229 + $0x70] sm:$0xff] %v1983
      %2002 = vst [vmem:[%s229 + $0x78] sm:$0xff] %v1985
      %s2003 = smul.u32 16, %s16
      %p2004 = scmp.lt.s32.totalorder %s2003, 63
      %s2005 = scalar_select %p2004, %s2003, 63
      %s2006 = smul.addr %s2005, 8
      %s2007 = scalar_lea.vmem %s5, %s2006
      // Predicated region
      $region41: #{chess_net_forward.1} parent=39 // pred_check
        %p2008 = pneg %p144
      $region42: #{chess_net_forward.1} parent=39 // pred_check_branch
        %2010 = sbr.rel (%p2008) target = $region44
      $region43: #{chess_net_forward.1} parent=39 // pred_region
        %s2011 = smul.u32 16, %s16
      $region44: #{chess_net_forward.1} parent=39 // pred_fallthru
        _
    $region40: #{chess_net_forward.1} parent=5 // pred_fallthru
      _
    %p2012 = scmp.le.s32.totalorder 2, %s11
    // Predicated region
    $region45: #{chess_net_forward.1} parent=5 // pred_check
      %p2013 = pneg %p2012
    $region46: #{chess_net_forward.1} parent=5 // pred_check_branch
      %2015 = sbr.rel (%p2013) target = $region48
    $region47: #{chess_net_forward.1} parent=5 // pred_region
      %s2016 = ssub.s32 %s11, 2
      // Predicated region
      $region49: #{chess_net_forward.1} parent=47 // pred_check
        %p2017 = pneg %p150
      $region50: #{chess_net_forward.1} parent=47 // pred_check_branch
        %2019 = sbr.rel (%p2017) target = $region52
      $region51: #{chess_net_forward.1} parent=47 // pred_region
        %s2020 = smul.u32 16, %s17
        %p2021 = scmp.lt.s32.totalorder %s2020, 63
        %s2022 = scalar_select %p2021, %s2020, 63
        %s2023 = smul.addr %s2022, 8
        %s2024 = scalar_lea.vmem %s5, %s2023
      $region52: #{chess_net_forward.1} parent=47 // pred_fallthru
        _
    $region48: #{chess_net_forward.1} parent=5 // pred_fallthru
      _
  $region6: #{chess_net_forward.1} parent=0 // loop_footer
    %s15 = sadd.s32 1, %s11
  $region7: #{chess_net_forward.1} parent=0 // loop_footer_branch
    %10 = sbr.rel target = $region3
  $region8: #{chess_net_forward.1} parent=0 // loop_exit
    _

</llo_original>
